<compile_context>
chip_gen: v7x
topology: tpu7x:2x2x1
jax: 0.10.0
libtpu: 0.0.40
codegen_flags: <defaults>
</compile_context>

<pallas_src>
import functools

import jax
import jax.numpy as jnp
from jax.experimental import pallas as pl
from jax.experimental.pallas import tpu as pltpu


# ------------------------------ slab packing ---------------------------------

def _round8(n):
    return (n + 7) // 8 * 8


def _weight_slab_layout(L, PA, F, H):
    """Row layout of the packed (rows, 128) weight slab.

    Returns (layout, total_rows) where layout[name] = (row_start, fan_in, fan_out)
    and fan_out is the lane-slice width the kernel reads.  Every block starts at
    an 8-aligned row offset so ref slices stay sublane aligned."""
    H4 = 4 * H
    entries = [
        ("cw1", L, H),
        ("cw2", H, H),
        ("cw3", H, F),
        ("wih_f", F, H4),
        ("wih_pa", PA, H4),
        ("whh", H, H4),
        ("w2", H, H),
        ("w3", H, 128),   # lane-dense Q head: only lane 0 is meaningful
    ]
    layout = {}
    row = 0
    for name, fin, fout in entries:
        layout[name] = (row, fin, fout)
        row += _round8(fin)
    return layout, row


def pack_critic_params(params, lidar_state_dim, position_state_dim, action_dim):
    """One-time host-side packing of the 15 parameter tensors into 2 slabs."""
    L = lidar_state_dim
    P, A = position_state_dim, action_dim
    H = params["whh"].shape[0]
    F = params["cw3"].shape[1]
    PA = _round8(P + A)                      # pos+act feature width, 8-aligned
    layout, nrows = _weight_slab_layout(L, PA, F, H)

    wslab = jnp.zeros((nrows, 128), jnp.float32)

    def put(slab, name, w):
        r0 = layout[name][0]
        return slab.at[r0:r0 + w.shape[0], :w.shape[1]].set(w)

    wslab = put(wslab, "cw1", params["cw1"])
    wslab = put(wslab, "cw2", params["cw2"])
    wslab = put(wslab, "cw3", params["cw3"])
    wslab = put(wslab, "wih_f", params["wih_f"])
    wih_pa = jnp.concatenate([params["wih_p"], params["wih_a"]], axis=0)
    wslab = put(wslab, "wih_pa", wih_pa)     # padded rows (zero) match padded pa cols
    wslab = put(wslab, "whh", params["whh"])
    wslab = put(wslab, "w2", params["w2"])
    wslab = put(wslab, "w3", params["w3"])   # (H, 1) -> lane 0 only, rest zero

    bslab = jnp.zeros((8, 128), jnp.float32)
    bslab = bslab.at[0, :H].set(params["cb1"][0])
    bslab = bslab.at[1, :H].set(params["cb2"][0])
    bslab = bslab.at[2, :F].set(params["cb3"][0])
    bslab = bslab.at[3, :4 * H].set(params["blstm"][0])
    bslab = bslab.at[4, :H].set(params["b2"][0])
    bslab = bslab.at[5, :1].set(params["b3"][0])

    return {"wslab": wslab, "bslab": bslab, "layout": layout,
            "H": H, "F": F, "PA": PA, "L": L, "P": P, "A": A}


# ----------------------------- fused Pallas kernel ---------------------------

def critic_fused_kernel(lidar_ref, pa_ref, w_ref, b_ref, out_ref, *,
                        B, T, H, layout):
    f32 = jnp.float32
    H4 = 4 * H

    def W(name):
        r0, fin, fout = layout[name]
        return w_ref[r0:r0 + fin, 0:fout]

    bias = b_ref[...]                                             # (8, 128) one vreg

    # ---- lidar_compress_net on all T*B rows at once (time-major rows) ----
    x = lidar_ref[...]                                            # (T*B, L)
    h1 = jnp.maximum(
        jnp.dot(x, W("cw1"), preferred_element_type=f32) + bias[0:1, 0:H], 0.0)
    h2 = jnp.maximum(
        jnp.dot(h1, W("cw2"), preferred_element_type=f32) + bias[1:2, 0:H], 0.0)
    feat = (jnp.dot(h2, W("cw3"), preferred_element_type=f32)
            + bias[2:3, 0:layout["cw3"][2]])                      # (T*B, F)

    # ---- LSTM input projection for ALL timesteps in one shot ----
    # pos+act already concatenated (and zero-padded) on the host -> 2 dots.
    gates_in = (jnp.dot(feat, W("wih_f"), preferred_element_type=f32)
                + jnp.dot(pa_ref[...], W("wih_pa"), preferred_element_type=f32)
                + bias[3:4, 0:H4])                                # (T*B, 4H)

    # ---- recurrence: only h @ whh + elementwise on the serial path ----
    whh = W("whh")
    h = jnp.zeros((B, H), f32)
    c = jnp.zeros((B, H), f32)
    hs = []
    for t in range(T):            # T small & static: unroll (LLO visibility)
        g = gates_in[t * B:(t + 1) * B, :] + jnp.dot(h, whh,
                                                     preferred_element_type=f32)
        # Whole-vreg transcendentals (4H = 128 lanes); EUP/XLU work hides under
        # the serial MXU latency, slice only for the elementwise combine.
        sig = jax.nn.sigmoid(g)
        th = jnp.tanh(g)
        i_g = sig[:, 0 * H:1 * H]
        f_g = sig[:, 1 * H:2 * H]
        g_g = th[:, 2 * H:3 * H]
        o_g = sig[:, 3 * H:4 * H]
        c = f_g * c + i_g * g_g
        h = o_g * jnp.tanh(c)
        hs.append(h)

    # ---- Q-head once over all timesteps (time-major stacking, contiguous) ----
    h_all = jnp.concatenate(hs, axis=0)                           # (T*B, H), row t*B+b
    q = jnp.maximum(h_all, 0.0)                                   # relu(l1 out)
    q = jnp.maximum(
        jnp.dot(q, W("w2"), preferred_element_type=f32) + bias[4:5, 0:H], 0.0)
    # Lane-dense final projection: lanes 1..127 of w3/b3 are zero -> output 0.
    q = jnp.dot(q, W("w3"), preferred_element_type=f32) + bias[5:6, 0:128]
    out_ref[...] = q                                              # (T*B, 128)


# ------------------------------- host wrapper --------------------------------

def critic_forward(packed, lidar_state, position_state, action):
    """lidar_state: (B, T, L); position_state: (B, T, P); action: (B, T, A).
    Returns q1: (B, T, 1)."""
    B, T, L = lidar_state.shape
    P = position_state.shape[-1]
    A = action.shape[-1]
    H, PA, layout = packed["H"], packed["PA"], packed["layout"]

    # Time-major inputs: row order t*B+b -> contiguous per-step slices in kernel.
    lidar_tm = jnp.transpose(lidar_state, (1, 0, 2)).reshape(T * B, L)
    pa = jnp.concatenate([position_state, action], axis=-1)       # (B, T, P+A)
    pa_tm = jnp.transpose(pa, (1, 0, 2)).reshape(T * B, P + A)
    if PA > P + A:
        pa_tm = jnp.pad(pa_tm, ((0, 0), (0, PA - (P + A))))

    vmem = pl.BlockSpec(memory_space=pltpu.MemorySpace.VMEM)
    q_tm = pl.pallas_call(
        functools.partial(critic_fused_kernel, B=B, T=T, H=H, layout=layout),
        out_shape=jax.ShapeDtypeStruct((T * B, 128), jnp.float32),
        in_specs=[vmem] * 4,
        out_specs=vmem,
    )(lidar_tm, pa_tm, packed["wslab"], packed["bslab"])

    # Lane-dense output slab: column 0 holds Q; reorder time-major -> (B, T, 1).
    return jnp.transpose(q_tm[:, :1].reshape(T, B, 1), (1, 0, 2))


# ------------------------------ parameter init --------------------------------

def init_params(key, lidar_state_dim, position_state_dim, lidar_feature_dim,
                action_dim, hidden_dim):
    """Deterministic synthetic parameters (PyTorch-style uniform fan-in init)."""
    ks = jax.random.split(key, 16)

    def lin(kw, kb, fan_in, fan_out):
        bound = 1.0 / jnp.sqrt(fan_in)
        w = jax.random.uniform(kw, (fan_in, fan_out), jnp.float32, -bound, bound)
        b = jax.random.uniform(kb, (1, fan_out), jnp.float32, -bound, bound)
        return w, b

    p = {}
    # lidar_compress_net
    p["cw1"], p["cb1"] = lin(ks[0], ks[1], lidar_state_dim, hidden_dim)
    p["cw2"], p["cb2"] = lin(ks[2], ks[3], hidden_dim, hidden_dim)
    p["cw3"], p["cb3"] = lin(ks[4], ks[5], hidden_dim, lidar_feature_dim)
    # LSTM l1 (wih split row-wise: feat / pos / act)
    F_dim, P_dim, A_dim = lidar_feature_dim, position_state_dim, action_dim
    in_dim = F_dim + P_dim + A_dim
    bound = 1.0 / jnp.sqrt(hidden_dim)
    wih = jax.random.uniform(ks[6], (in_dim, 4 * hidden_dim), jnp.float32, -bound, bound)
    p["wih_f"] = wih[:F_dim]
    p["wih_p"] = wih[F_dim:F_dim + P_dim]
    p["wih_a"] = wih[F_dim + P_dim:]
    p["whh"] = jax.random.uniform(ks[7], (hidden_dim, 4 * hidden_dim), jnp.float32, -bound, bound)
    b_ih = jax.random.uniform(ks[8], (1, 4 * hidden_dim), jnp.float32, -bound, bound)
    b_hh = jax.random.uniform(ks[9], (1, 4 * hidden_dim), jnp.float32, -bound, bound)
    p["blstm"] = b_ih + b_hh
    # l2, l3
    p["w2"], p["b2"] = lin(ks[10], ks[11], hidden_dim, hidden_dim)
    p["w3"], p["b3"] = lin(ks[12], ks[13], hidden_dim, 1)
    return p


# ---------------------------- pure-JAX reference -------------------------------

def critic_reference(params, lidar_state, position_state, action):
    B, T, L = lidar_state.shape
    x = lidar_state.reshape(B * T, L)
    h = jnp.maximum(x @ params["cw1"] + params["cb1"], 0.0)
    h = jnp.maximum(h @ params["cw2"] + params["cb2"], 0.0)
    feat = (h @ params["cw3"] + params["cb3"]).reshape(B, T, -1)

    sa = jnp.concatenate([feat, position_state, action], axis=-1)
    wih = jnp.concatenate([params["wih_f"], params["wih_p"], params["wih_a"]], axis=0)
    H = params["whh"].shape[0]
    hs = jnp.zeros((B, H), jnp.float32)
    cs = jnp.zeros((B, H), jnp.float32)
    outs = []
    for t in range(T):
        g = sa[:, t, :] @ wih + hs @ params["whh"] + params["blstm"]
        i_g = jax.nn.sigmoid(g[:, 0 * H:1 * H])
        f_g = jax.nn.sigmoid(g[:, 1 * H:2 * H])
        g_g = jnp.tanh(g[:, 2 * H:3 * H])
        o_g = jax.nn.sigmoid(g[:, 3 * H:4 * H])
        cs = f_g * cs + i_g * g_g
        hs = o_g * jnp.tanh(cs)
        q = jnp.maximum(hs, 0.0)
        q = jnp.maximum(q @ params["w2"] + params["b2"], 0.0)
        q = q @ params["w3"] + params["b3"]
        outs.append(q)
    return jnp.stack(outs, axis=1)  # (B, T, 1)


# ------------------------------------ main -------------------------------------

if __name__ == "__main__":
    B, T = 2, 8
    lidar_state_dim = 16
    position_state_dim = 4
    action_dim = 2
    lidar_feature_dim = 8
    hidden_dim = 32  # 4H = 128 exactly fills the lane dim

    key = jax.random.PRNGKey(0)
    kp, kl, kpos, ka = jax.random.split(key, 4)

    params = init_params(kp, lidar_state_dim, position_state_dim,
                         lidar_feature_dim, action_dim, hidden_dim)
    packed = pack_critic_params(params, lidar_state_dim, position_state_dim,
                                action_dim)   # one-time host-side packing

    lidar_state = jax.random.normal(kl, (B, T, lidar_state_dim), jnp.float32)
    position_state = jax.random.normal(kpos, (B, T, position_state_dim), jnp.float32)
    action = jax.random.normal(ka, (B, T, action_dim), jnp.float32)

    q1 = critic_forward(packed, lidar_state, position_state, action)
    q1 = jax.block_until_ready(q1)

    q_ref = critic_reference(params, lidar_state, position_state, action)
    assert q1.shape == (B, T, 1)
    assert jnp.allclose(q1, q_ref, atol=1e-4, rtol=1e-4), "mismatch vs reference"

    print("KERNEL_OK")
</pallas_src>

<mosaic_0001>
module attributes {stable_mosaic.version = 11 : i64} {
  func.func @critic_fused_kernel(%arg0: memref<16x16xf32, #tpu.memory_space<vmem>>, %arg1: memref<16x8xf32, #tpu.memory_space<vmem>>, %arg2: memref<192x128xf32, #tpu.memory_space<vmem>>, %arg3: memref<8x128xf32, #tpu.memory_space<vmem>>, %arg4: memref<16x128xf32, #tpu.memory_space<vmem>>) attributes {dimension_semantics = [], scalar_prefetch = 0 : i64, scratch_operands = 0 : i64, tpu.core_type = #tpu.core_type<tc>} {
    %c0 = arith.constant 0 : index
    %c0_0 = arith.constant 0 : index
    %0 = vector.load %arg3[%c0, %c0_0] : memref<8x128xf32, #tpu.memory_space<vmem>>, vector<8x128xf32>
    %c0_1 = arith.constant 0 : index
    %c0_2 = arith.constant 0 : index
    %1 = vector.load %arg0[%c0_1, %c0_2] : memref<16x16xf32, #tpu.memory_space<vmem>>, vector<16x16xf32>
    %c0_3 = arith.constant 0 : index
    %c0_4 = arith.constant 0 : index
    %2 = vector.load %arg2[%c0_3, %c0_4] : memref<192x128xf32, #tpu.memory_space<vmem>>, vector<16x32xf32>
    %cst = arith.constant dense<0.000000e+00> : vector<16x32xf32>
    %3 = tpu.matmul %1, %2, %cst {dimension_numbers = #tpu.dot_dimension_numbers<[1], [0], [0], [1], [0, 0, 1, 1], [], []>} : vector<16x16xf32>, vector<16x32xf32>, vector<16x32xf32> -> vector<16x32xf32>
    %4 = vector.extract_strided_slice %0 {offsets = [0, 0], sizes = [1, 32], strides = [1, 1]} : vector<8x128xf32> to vector<1x32xf32>
    %5 = vector.broadcast %4 : vector<1x32xf32> to vector<16x32xf32>
    %6 = arith.addf %3, %5 : vector<16x32xf32>
    %cst_5 = arith.constant 0.000000e+00 : f32
    %7 = vector.broadcast %cst_5 : f32 to vector<16x32xf32>
    %8 = arith.maximumf %6, %7 : vector<16x32xf32>
    %c16 = arith.constant 16 : index
    %c0_6 = arith.constant 0 : index
    %9 = vector.load %arg2[%c16, %c0_6] : memref<192x128xf32, #tpu.memory_space<vmem>>, vector<32x32xf32>
    %cst_7 = arith.constant dense<0.000000e+00> : vector<16x32xf32>
    %10 = tpu.matmul %8, %9, %cst_7 {dimension_numbers = #tpu.dot_dimension_numbers<[1], [0], [0], [1], [0, 0, 1, 1], [], []>} : vector<16x32xf32>, vector<32x32xf32>, vector<16x32xf32> -> vector<16x32xf32>
    %11 = vector.extract_strided_slice %0 {offsets = [1, 0], sizes = [1, 32], strides = [1, 1]} : vector<8x128xf32> to vector<1x32xf32>
    %12 = vector.broadcast %11 : vector<1x32xf32> to vector<16x32xf32>
    %13 = arith.addf %10, %12 : vector<16x32xf32>
    %cst_8 = arith.constant 0.000000e+00 : f32
    %14 = vector.broadcast %cst_8 : f32 to vector<16x32xf32>
    %15 = arith.maximumf %13, %14 : vector<16x32xf32>
    %c48 = arith.constant 48 : index
    %c0_9 = arith.constant 0 : index
    %16 = vector.load %arg2[%c48, %c0_9] : memref<192x128xf32, #tpu.memory_space<vmem>>, vector<32x8xf32>
    %cst_10 = arith.constant dense<0.000000e+00> : vector<16x8xf32>
    %17 = tpu.matmul %15, %16, %cst_10 {dimension_numbers = #tpu.dot_dimension_numbers<[1], [0], [0], [1], [0, 0, 1, 1], [], []>} : vector<16x32xf32>, vector<32x8xf32>, vector<16x8xf32> -> vector<16x8xf32>
    %18 = vector.extract_strided_slice %0 {offsets = [2, 0], sizes = [1, 8], strides = [1, 1]} : vector<8x128xf32> to vector<1x8xf32>
    %19 = vector.broadcast %18 : vector<1x8xf32> to vector<16x8xf32>
    %20 = arith.addf %17, %19 : vector<16x8xf32>
    %c80 = arith.constant 80 : index
    %c0_11 = arith.constant 0 : index
    %21 = vector.load %arg2[%c80, %c0_11] : memref<192x128xf32, #tpu.memory_space<vmem>>, vector<8x128xf32>
    %cst_12 = arith.constant dense<0.000000e+00> : vector<16x128xf32>
    %22 = tpu.matmul %20, %21, %cst_12 {dimension_numbers = #tpu.dot_dimension_numbers<[1], [0], [0], [1], [0, 0, 1, 1], [], []>} : vector<16x8xf32>, vector<8x128xf32>, vector<16x128xf32> -> vector<16x128xf32>
    %c0_13 = arith.constant 0 : index
    %c0_14 = arith.constant 0 : index
    %23 = vector.load %arg1[%c0_13, %c0_14] : memref<16x8xf32, #tpu.memory_space<vmem>>, vector<16x8xf32>
    %c88 = arith.constant 88 : index
    %c0_15 = arith.constant 0 : index
    %24 = vector.load %arg2[%c88, %c0_15] : memref<192x128xf32, #tpu.memory_space<vmem>>, vector<8x128xf32>
    %cst_16 = arith.constant dense<0.000000e+00> : vector<16x128xf32>
    %25 = tpu.matmul %23, %24, %cst_16 {dimension_numbers = #tpu.dot_dimension_numbers<[1], [0], [0], [1], [0, 0, 1, 1], [], []>} : vector<16x8xf32>, vector<8x128xf32>, vector<16x128xf32> -> vector<16x128xf32>
    %26 = arith.addf %22, %25 : vector<16x128xf32>
    %27 = vector.extract_strided_slice %0 {offsets = [3, 0], sizes = [1, 128], strides = [1, 1]} : vector<8x128xf32> to vector<1x128xf32>
    %28 = vector.broadcast %27 : vector<1x128xf32> to vector<16x128xf32>
    %29 = arith.addf %26, %28 : vector<16x128xf32>
    %c96 = arith.constant 96 : index
    %c0_17 = arith.constant 0 : index
    %30 = vector.load %arg2[%c96, %c0_17] : memref<192x128xf32, #tpu.memory_space<vmem>>, vector<32x128xf32>
    %cst_18 = arith.constant 0.000000e+00 : f32
    %31 = vector.broadcast %cst_18 : f32 to vector<2x32xf32>
    %cst_19 = arith.constant 0.000000e+00 : f32
    %32 = vector.broadcast %cst_19 : f32 to vector<2x32xf32>
    %33 = vector.extract_strided_slice %29 {offsets = [0, 0], sizes = [2, 128], strides = [1, 1]} : vector<16x128xf32> to vector<2x128xf32>
    %cst_20 = arith.constant dense<0.000000e+00> : vector<2x128xf32>
    %34 = tpu.matmul %31, %30, %cst_20 {dimension_numbers = #tpu.dot_dimension_numbers<[1], [0], [0], [1], [0, 0, 1, 1], [], []>} : vector<2x32xf32>, vector<32x128xf32>, vector<2x128xf32> -> vector<2x128xf32>
    %35 = arith.addf %33, %34 : vector<2x128xf32>
    %36 = arith.negf %35 : vector<2x128xf32>
    %37 = math.exp %36 : vector<2x128xf32>
    %cst_21 = arith.constant 1.000000e+00 : f32
    %38 = vector.broadcast %cst_21 : f32 to vector<2x128xf32>
    %39 = arith.addf %38, %37 : vector<2x128xf32>
    %40 = arith.divf %38, %39 : vector<2x128xf32>
    %41 = math.tanh %35 : vector<2x128xf32>
    %42 = vector.extract_strided_slice %40 {offsets = [0, 0], sizes = [2, 32], strides = [1, 1]} : vector<2x128xf32> to vector<2x32xf32>
    %43 = vector.extract_strided_slice %40 {offsets = [0, 32], sizes = [2, 32], strides = [1, 1]} : vector<2x128xf32> to vector<2x32xf32>
    %44 = vector.extract_strided_slice %41 {offsets = [0, 64], sizes = [2, 32], strides = [1, 1]} : vector<2x128xf32> to vector<2x32xf32>
    %45 = vector.extract_strided_slice %40 {offsets = [0, 96], sizes = [2, 32], strides = [1, 1]} : vector<2x128xf32> to vector<2x32xf32>
    %46 = arith.mulf %43, %32 : vector<2x32xf32>
    %47 = arith.mulf %42, %44 : vector<2x32xf32>
    %48 = arith.addf %46, %47 : vector<2x32xf32>
    %49 = math.tanh %48 : vector<2x32xf32>
    %50 = arith.mulf %45, %49 : vector<2x32xf32>
    %51 = vector.extract_strided_slice %29 {offsets = [2, 0], sizes = [2, 128], strides = [1, 1]} : vector<16x128xf32> to vector<2x128xf32>
    %cst_22 = arith.constant dense<0.000000e+00> : vector<2x128xf32>
    %52 = tpu.matmul %50, %30, %cst_22 {dimension_numbers = #tpu.dot_dimension_numbers<[1], [0], [0], [1], [0, 0, 1, 1], [], []>} : vector<2x32xf32>, vector<32x128xf32>, vector<2x128xf32> -> vector<2x128xf32>
    %53 = arith.addf %51, %52 : vector<2x128xf32>
    %54 = arith.negf %53 : vector<2x128xf32>
    %55 = math.exp %54 : vector<2x128xf32>
    %cst_23 = arith.constant 1.000000e+00 : f32
    %56 = vector.broadcast %cst_23 : f32 to vector<2x128xf32>
    %57 = arith.addf %56, %55 : vector<2x128xf32>
    %58 = arith.divf %56, %57 : vector<2x128xf32>
    %59 = math.tanh %53 : vector<2x128xf32>
    %60 = vector.extract_strided_slice %58 {offsets = [0, 0], sizes = [2, 32], strides = [1, 1]} : vector<2x128xf32> to vector<2x32xf32>
    %61 = vector.extract_strided_slice %58 {offsets = [0, 32], sizes = [2, 32], strides = [1, 1]} : vector<2x128xf32> to vector<2x32xf32>
    %62 = vector.extract_strided_slice %59 {offsets = [0, 64], sizes = [2, 32], strides = [1, 1]} : vector<2x128xf32> to vector<2x32xf32>
    %63 = vector.extract_strided_slice %58 {offsets = [0, 96], sizes = [2, 32], strides = [1, 1]} : vector<2x128xf32> to vector<2x32xf32>
    %64 = arith.mulf %61, %48 : vector<2x32xf32>
    %65 = arith.mulf %60, %62 : vector<2x32xf32>
    %66 = arith.addf %64, %65 : vector<2x32xf32>
    %67 = math.tanh %66 : vector<2x32xf32>
    %68 = arith.mulf %63, %67 : vector<2x32xf32>
    %69 = vector.extract_strided_slice %29 {offsets = [4, 0], sizes = [2, 128], strides = [1, 1]} : vector<16x128xf32> to vector<2x128xf32>
    %cst_24 = arith.constant dense<0.000000e+00> : vector<2x128xf32>
    %70 = tpu.matmul %68, %30, %cst_24 {dimension_numbers = #tpu.dot_dimension_numbers<[1], [0], [0], [1], [0, 0, 1, 1], [], []>} : vector<2x32xf32>, vector<32x128xf32>, vector<2x128xf32> -> vector<2x128xf32>
    %71 = arith.addf %69, %70 : vector<2x128xf32>
    %72 = arith.negf %71 : vector<2x128xf32>
    %73 = math.exp %72 : vector<2x128xf32>
    %cst_25 = arith.constant 1.000000e+00 : f32
    %74 = vector.broadcast %cst_25 : f32 to vector<2x128xf32>
    %75 = arith.addf %74, %73 : vector<2x128xf32>
    %76 = arith.divf %74, %75 : vector<2x128xf32>
    %77 = math.tanh %71 : vector<2x128xf32>
    %78 = vector.extract_strided_slice %76 {offsets = [0, 0], sizes = [2, 32], strides = [1, 1]} : vector<2x128xf32> to vector<2x32xf32>
    %79 = vector.extract_strided_slice %76 {offsets = [0, 32], sizes = [2, 32], strides = [1, 1]} : vector<2x128xf32> to vector<2x32xf32>
    %80 = vector.extract_strided_slice %77 {offsets = [0, 64], sizes = [2, 32], strides = [1, 1]} : vector<2x128xf32> to vector<2x32xf32>
    %81 = vector.extract_strided_slice %76 {offsets = [0, 96], sizes = [2, 32], strides = [1, 1]} : vector<2x128xf32> to vector<2x32xf32>
    %82 = arith.mulf %79, %66 : vector<2x32xf32>
    %83 = arith.mulf %78, %80 : vector<2x32xf32>
    %84 = arith.addf %82, %83 : vector<2x32xf32>
    %85 = math.tanh %84 : vector<2x32xf32>
    %86 = arith.mulf %81, %85 : vector<2x32xf32>
    %87 = vector.extract_strided_slice %29 {offsets = [6, 0], sizes = [2, 128], strides = [1, 1]} : vector<16x128xf32> to vector<2x128xf32>
    %cst_26 = arith.constant dense<0.000000e+00> : vector<2x128xf32>
    %88 = tpu.matmul %86, %30, %cst_26 {dimension_numbers = #tpu.dot_dimension_numbers<[1], [0], [0], [1], [0, 0, 1, 1], [], []>} : vector<2x32xf32>, vector<32x128xf32>, vector<2x128xf32> -> vector<2x128xf32>
    %89 = arith.addf %87, %88 : vector<2x128xf32>
    %90 = arith.negf %89 : vector<2x128xf32>
    %91 = math.exp %90 : vector<2x128xf32>
    %cst_27 = arith.constant 1.000000e+00 : f32
    %92 = vector.broadcast %cst_27 : f32 to vector<2x128xf32>
    %93 = arith.addf %92, %91 : vector<2x128xf32>
    %94 = arith.divf %92, %93 : vector<2x128xf32>
    %95 = math.tanh %89 : vector<2x128xf32>
    %96 = vector.extract_strided_slice %94 {offsets = [0, 0], sizes = [2, 32], strides = [1, 1]} : vector<2x128xf32> to vector<2x32xf32>
    %97 = vector.extract_strided_slice %94 {offsets = [0, 32], sizes = [2, 32], strides = [1, 1]} : vector<2x128xf32> to vector<2x32xf32>
    %98 = vector.extract_strided_slice %95 {offsets = [0, 64], sizes = [2, 32], strides = [1, 1]} : vector<2x128xf32> to vector<2x32xf32>
    %99 = vector.extract_strided_slice %94 {offsets = [0, 96], sizes = [2, 32], strides = [1, 1]} : vector<2x128xf32> to vector<2x32xf32>
    %100 = arith.mulf %97, %84 : vector<2x32xf32>
    %101 = arith.mulf %96, %98 : vector<2x32xf32>
    %102 = arith.addf %100, %101 : vector<2x32xf32>
    %103 = math.tanh %102 : vector<2x32xf32>
    %104 = arith.mulf %99, %103 : vector<2x32xf32>
    %105 = vector.extract_strided_slice %29 {offsets = [8, 0], sizes = [2, 128], strides = [1, 1]} : vector<16x128xf32> to vector<2x128xf32>
    %cst_28 = arith.constant dense<0.000000e+00> : vector<2x128xf32>
    %106 = tpu.matmul %104, %30, %cst_28 {dimension_numbers = #tpu.dot_dimension_numbers<[1], [0], [0], [1], [0, 0, 1, 1], [], []>} : vector<2x32xf32>, vector<32x128xf32>, vector<2x128xf32> -> vector<2x128xf32>
    %107 = arith.addf %105, %106 : vector<2x128xf32>
    %108 = arith.negf %107 : vector<2x128xf32>
    %109 = math.exp %108 : vector<2x128xf32>
    %cst_29 = arith.constant 1.000000e+00 : f32
    %110 = vector.broadcast %cst_29 : f32 to vector<2x128xf32>
    %111 = arith.addf %110, %109 : vector<2x128xf32>
    %112 = arith.divf %110, %111 : vector<2x128xf32>
    %113 = math.tanh %107 : vector<2x128xf32>
    %114 = vector.extract_strided_slice %112 {offsets = [0, 0], sizes = [2, 32], strides = [1, 1]} : vector<2x128xf32> to vector<2x32xf32>
    %115 = vector.extract_strided_slice %112 {offsets = [0, 32], sizes = [2, 32], strides = [1, 1]} : vector<2x128xf32> to vector<2x32xf32>
    %116 = vector.extract_strided_slice %113 {offsets = [0, 64], sizes = [2, 32], strides = [1, 1]} : vector<2x128xf32> to vector<2x32xf32>
    %117 = vector.extract_strided_slice %112 {offsets = [0, 96], sizes = [2, 32], strides = [1, 1]} : vector<2x128xf32> to vector<2x32xf32>
    %118 = arith.mulf %115, %102 : vector<2x32xf32>
    %119 = arith.mulf %114, %116 : vector<2x32xf32>
    %120 = arith.addf %118, %119 : vector<2x32xf32>
    %121 = math.tanh %120 : vector<2x32xf32>
    %122 = arith.mulf %117, %121 : vector<2x32xf32>
    %123 = vector.extract_strided_slice %29 {offsets = [10, 0], sizes = [2, 128], strides = [1, 1]} : vector<16x128xf32> to vector<2x128xf32>
    %cst_30 = arith.constant dense<0.000000e+00> : vector<2x128xf32>
    %124 = tpu.matmul %122, %30, %cst_30 {dimension_numbers = #tpu.dot_dimension_numbers<[1], [0], [0], [1], [0, 0, 1, 1], [], []>} : vector<2x32xf32>, vector<32x128xf32>, vector<2x128xf32> -> vector<2x128xf32>
    %125 = arith.addf %123, %124 : vector<2x128xf32>
    %126 = arith.negf %125 : vector<2x128xf32>
    %127 = math.exp %126 : vector<2x128xf32>
    %cst_31 = arith.constant 1.000000e+00 : f32
    %128 = vector.broadcast %cst_31 : f32 to vector<2x128xf32>
    %129 = arith.addf %128, %127 : vector<2x128xf32>
    %130 = arith.divf %128, %129 : vector<2x128xf32>
    %131 = math.tanh %125 : vector<2x128xf32>
    %132 = vector.extract_strided_slice %130 {offsets = [0, 0], sizes = [2, 32], strides = [1, 1]} : vector<2x128xf32> to vector<2x32xf32>
    %133 = vector.extract_strided_slice %130 {offsets = [0, 32], sizes = [2, 32], strides = [1, 1]} : vector<2x128xf32> to vector<2x32xf32>
    %134 = vector.extract_strided_slice %131 {offsets = [0, 64], sizes = [2, 32], strides = [1, 1]} : vector<2x128xf32> to vector<2x32xf32>
    %135 = vector.extract_strided_slice %130 {offsets = [0, 96], sizes = [2, 32], strides = [1, 1]} : vector<2x128xf32> to vector<2x32xf32>
    %136 = arith.mulf %133, %120 : vector<2x32xf32>
    %137 = arith.mulf %132, %134 : vector<2x32xf32>
    %138 = arith.addf %136, %137 : vector<2x32xf32>
    %139 = math.tanh %138 : vector<2x32xf32>
    %140 = arith.mulf %135, %139 : vector<2x32xf32>
    %141 = vector.extract_strided_slice %29 {offsets = [12, 0], sizes = [2, 128], strides = [1, 1]} : vector<16x128xf32> to vector<2x128xf32>
    %cst_32 = arith.constant dense<0.000000e+00> : vector<2x128xf32>
    %142 = tpu.matmul %140, %30, %cst_32 {dimension_numbers = #tpu.dot_dimension_numbers<[1], [0], [0], [1], [0, 0, 1, 1], [], []>} : vector<2x32xf32>, vector<32x128xf32>, vector<2x128xf32> -> vector<2x128xf32>
    %143 = arith.addf %141, %142 : vector<2x128xf32>
    %144 = arith.negf %143 : vector<2x128xf32>
    %145 = math.exp %144 : vector<2x128xf32>
    %cst_33 = arith.constant 1.000000e+00 : f32
    %146 = vector.broadcast %cst_33 : f32 to vector<2x128xf32>
    %147 = arith.addf %146, %145 : vector<2x128xf32>
    %148 = arith.divf %146, %147 : vector<2x128xf32>
    %149 = math.tanh %143 : vector<2x128xf32>
    %150 = vector.extract_strided_slice %148 {offsets = [0, 0], sizes = [2, 32], strides = [1, 1]} : vector<2x128xf32> to vector<2x32xf32>
    %151 = vector.extract_strided_slice %148 {offsets = [0, 32], sizes = [2, 32], strides = [1, 1]} : vector<2x128xf32> to vector<2x32xf32>
    %152 = vector.extract_strided_slice %149 {offsets = [0, 64], sizes = [2, 32], strides = [1, 1]} : vector<2x128xf32> to vector<2x32xf32>
    %153 = vector.extract_strided_slice %148 {offsets = [0, 96], sizes = [2, 32], strides = [1, 1]} : vector<2x128xf32> to vector<2x32xf32>
    %154 = arith.mulf %151, %138 : vector<2x32xf32>
    %155 = arith.mulf %150, %152 : vector<2x32xf32>
    %156 = arith.addf %154, %155 : vector<2x32xf32>
    %157 = math.tanh %156 : vector<2x32xf32>
    %158 = arith.mulf %153, %157 : vector<2x32xf32>
    %159 = vector.extract_strided_slice %29 {offsets = [14, 0], sizes = [2, 128], strides = [1, 1]} : vector<16x128xf32> to vector<2x128xf32>
    %cst_34 = arith.constant dense<0.000000e+00> : vector<2x128xf32>
    %160 = tpu.matmul %158, %30, %cst_34 {dimension_numbers = #tpu.dot_dimension_numbers<[1], [0], [0], [1], [0, 0, 1, 1], [], []>} : vector<2x32xf32>, vector<32x128xf32>, vector<2x128xf32> -> vector<2x128xf32>
    %161 = arith.addf %159, %160 : vector<2x128xf32>
    %162 = arith.negf %161 : vector<2x128xf32>
    %163 = math.exp %162 : vector<2x128xf32>
    %cst_35 = arith.constant 1.000000e+00 : f32
    %164 = vector.broadcast %cst_35 : f32 to vector<2x128xf32>
    %165 = arith.addf %164, %163 : vector<2x128xf32>
    %166 = arith.divf %164, %165 : vector<2x128xf32>
    %167 = math.tanh %161 : vector<2x128xf32>
    %168 = vector.extract_strided_slice %166 {offsets = [0, 0], sizes = [2, 32], strides = [1, 1]} : vector<2x128xf32> to vector<2x32xf32>
    %169 = vector.extract_strided_slice %166 {offsets = [0, 32], sizes = [2, 32], strides = [1, 1]} : vector<2x128xf32> to vector<2x32xf32>
    %170 = vector.extract_strided_slice %167 {offsets = [0, 64], sizes = [2, 32], strides = [1, 1]} : vector<2x128xf32> to vector<2x32xf32>
    %171 = vector.extract_strided_slice %166 {offsets = [0, 96], sizes = [2, 32], strides = [1, 1]} : vector<2x128xf32> to vector<2x32xf32>
    %172 = arith.mulf %169, %156 : vector<2x32xf32>
    %173 = arith.mulf %168, %170 : vector<2x32xf32>
    %174 = arith.addf %172, %173 : vector<2x32xf32>
    %175 = math.tanh %174 : vector<2x32xf32>
    %176 = arith.mulf %171, %175 : vector<2x32xf32>
    %177 = tpu.concatenate %50, %68, %86, %104, %122, %140, %158, %176 in 0 : vector<2x32xf32>, vector<2x32xf32>, vector<2x32xf32>, vector<2x32xf32>, vector<2x32xf32>, vector<2x32xf32>, vector<2x32xf32>, vector<2x32xf32> -> vector<16x32xf32>
    %cst_36 = arith.constant 0.000000e+00 : f32
    %178 = vector.broadcast %cst_36 : f32 to vector<16x32xf32>
    %179 = arith.maximumf %177, %178 : vector<16x32xf32>
    %c128 = arith.constant 128 : index
    %c0_37 = arith.constant 0 : index
    %180 = vector.load %arg2[%c128, %c0_37] : memref<192x128xf32, #tpu.memory_space<vmem>>, vector<32x32xf32>
    %cst_38 = arith.constant dense<0.000000e+00> : vector<16x32xf32>
    %181 = tpu.matmul %179, %180, %cst_38 {dimension_numbers = #tpu.dot_dimension_numbers<[1], [0], [0], [1], [0, 0, 1, 1], [], []>} : vector<16x32xf32>, vector<32x32xf32>, vector<16x32xf32> -> vector<16x32xf32>
    %182 = vector.extract_strided_slice %0 {offsets = [4, 0], sizes = [1, 32], strides = [1, 1]} : vector<8x128xf32> to vector<1x32xf32>
    %183 = vector.broadcast %182 : vector<1x32xf32> to vector<16x32xf32>
    %184 = arith.addf %181, %183 : vector<16x32xf32>
    %cst_39 = arith.constant 0.000000e+00 : f32
    %185 = vector.broadcast %cst_39 : f32 to vector<16x32xf32>
    %186 = arith.maximumf %184, %185 : vector<16x32xf32>
    %c160 = arith.constant 160 : index
    %c0_40 = arith.constant 0 : index
    %187 = vector.load %arg2[%c160, %c0_40] : memref<192x128xf32, #tpu.memory_space<vmem>>, vector<32x128xf32>
    %cst_41 = arith.constant dense<0.000000e+00> : vector<16x128xf32>
    %188 = tpu.matmul %186, %187, %cst_41 {dimension_numbers = #tpu.dot_dimension_numbers<[1], [0], [0], [1], [0, 0, 1, 1], [], []>} : vector<16x32xf32>, vector<32x128xf32>, vector<16x128xf32> -> vector<16x128xf32>
    %189 = vector.extract_strided_slice %0 {offsets = [5, 0], sizes = [1, 128], strides = [1, 1]} : vector<8x128xf32> to vector<1x128xf32>
    %190 = vector.broadcast %189 : vector<1x128xf32> to vector<16x128xf32>
    %191 = arith.addf %188, %190 : vector<16x128xf32>
    %c0_42 = arith.constant 0 : index
    %c0_43 = arith.constant 0 : index
    %192 = vector.load %arg4[%c0_42, %c0_43] : memref<16x128xf32, #tpu.memory_space<vmem>>, vector<16x128xf32>
    tpu.vector_store %arg4[%c0_42, %c0_43], %191 {strides = array<i32>} : memref<16x128xf32, #tpu.memory_space<vmem>>, vector<16x128xf32>,
    return
  }
}

</mosaic_0001>

<llo_original>
// kernel: tpu_custom_call.1
$region0: #{tpu_custom_call.1}
  #allocation0 [shape = 'u32[]', space=smem, size = 0x4, offset = 0x4, fixed_abs, tag = 'smem constant byte address 0x4 - core index']
  #allocation1 [shape = 'u32[144,128]{1,0:T(1,128)}', space=vmem, size = 0x12000, scoped, tag = 'internal scratch']
  %s0 = inlined_call_operand.vmem [shape: f32[16,16], index: 0, kind: input, shape index: {}]
  %s1 = inlined_call_operand.vmem [shape: f32[16,8], index: 1, kind: input, shape index: {}]
  %s2 = inlined_call_operand.hbm [shape: f32[192,128], index: 2, kind: input, shape index: {}]
  %s3 = inlined_call_operand.vmem [shape: f32[8,128], index: 3, kind: input, shape index: {}]
  %s4 = inlined_call_operand.hbm [shape: f32[16,128], index: 4, kind: output, shape index: {}]
  %s5 = sld [smem:[#allocation0]]
  $region30: #{tpu_custom_call.1} parent=0
    _
  %s7 = ssub.s32 1, %s5
  %s8 = scalar_select 0, %s7, %s5
  $region1: #{tpu_custom_call.1} parent=0
    #allocation2 [shape = 'u8[98304]{0}', space=vmem, size = 0x18000, scoped, tag = 'input window, operand 2, single buffered']
    #allocation3 [shape = 's32[1]{0}', space=sflag, size = 0x4, scoped, tag = 'scoped memory for tpu_custom_call.1']
    #allocation4 [shape = 's32[1]{0}', space=sflag, size = 0x4, scoped, tag = 'scoped memory for tpu_custom_call.1']
    #allocation5 [shape = 'u8[8192]{0}', space=vmem, size = 0x2000, scoped, tag = 'output window, operand 0, single buffered']
    %9 = vsyncpa [#allocation3], 0
    %10 = vsyncpa [#allocation4], 0
    // Predicated region
    $region2: #{tpu_custom_call.1} parent=1 // pred_check
      _
    $region3: #{tpu_custom_call.1} parent=1 // pred_check_branch
      %12 = sbr.rel (0) target = $region5
    $region4: #{tpu_custom_call.1} parent=1 // pred_region
      _
    $region5: #{tpu_custom_call.1} parent=1 // pred_fallthru
      _
    // Predicated region
    $region6: #{tpu_custom_call.1} parent=1 // pred_check
      _
    $region7: #{tpu_custom_call.1} parent=1 // pred_check_branch
      %14 = sbr.rel (0) target = $region9
    $region8: #{tpu_custom_call.1} parent=1 // pred_region
      _
    $region9: #{tpu_custom_call.1} parent=1 // pred_fallthru
      _
    // Predicated region
    $region10: #{tpu_custom_call.1} parent=1 // pred_check
      _
    $region11: #{tpu_custom_call.1} parent=1 // pred_check_branch
      %16 = sbr.rel (0) target = $region13
    $region12: #{tpu_custom_call.1} parent=1 // pred_region
      %s18 = ssub.s32 3072, 3072
      %19 = vsyncadd [#allocation3], %s18
      %s20 = sshll.u32 [#allocation2], 4
      %s21 = int_to_ptr.vmem [resolvable:$true] %s20
      %26 = dma.hbm_to_vmem [thread:$0]  %s2, 3072, %s21, [#allocation3], 128, 128, 8
    $region13: #{tpu_custom_call.1} parent=1 // pred_fallthru
      _
    // Predicated region
    $region14: #{tpu_custom_call.1} parent=1 // pred_check
      _
    $region15: #{tpu_custom_call.1} parent=1 // pred_check_branch
      %28 = sbr.rel (0) target = $region17
    $region16: #{tpu_custom_call.1} parent=1 // pred_region
      _
    $region17: #{tpu_custom_call.1} parent=1 // pred_fallthru
      _
    // Predicated region
    $region18: #{tpu_custom_call.1} parent=1 // pred_check
      _
    $region19: #{tpu_custom_call.1} parent=1 // pred_check_branch
      %30 = sbr.rel (0) target = $region21
    $region20: #{tpu_custom_call.1} parent=1 // pred_region
      %31 = dma.done [#allocation3], 3072
    $region21: #{tpu_custom_call.1} parent=1 // pred_fallthru
      _
    %v32 = vld [vmem:[%s3] sm:$0xff]
    %v33 = vld [vmem:[%s0] sm:$0xff]
    %v34 = vld [vmem:[%s0 + $0x8] sm:$0xff]
    %v35 = vld [vmem:[#allocation2] sm:$0xff]
    %v36 = vld [vmem:[#allocation2 + $0x8] sm:$0xff]
    %v37 = vlaneseq
    %v38 = vshrl.u32 %v37, 7
    %v39 = vsub.s32 0, %v38
    %v40 = vrot.slane %v32, %v39
    %vm41 = vcmask 130048
    %v43 = vsel %vm41, %v33, 0
    %v46 = vsel %vm41, %v34, 0
    %48 = vmatprep.subr.mxu0 0.0
    %49 = vmatpush1.msra.mxu0 %v35
    %50 = vmatprep.subr.mxu0 0.0
    %51 = vmatpush1.msra.mxu0 %v36
    %52 = vmatprep.subr.mxu0 0.0
    %53 = vmatpush1.msra.mxu0 0.0
    %54 = vmatprep.subr.mxu0 0.0
    %55 = vmatpush1.msra.mxu0 0.0
    %56 = vmatprep.subr.mxu0 0.0
    %57 = vmatpush1.msra.mxu0 0.0
    %58 = vmatprep.subr.mxu0 0.0
    %59 = vmatpush1.msra.mxu0 0.0
    %60 = vmatprep.subr.mxu0 0.0
    %61 = vmatpush1.msra.mxu0 0.0
    %62 = vmatprep.subr.mxu0 0.0
    %63 = vmatpush1.msra.mxu0 0.0
    %64 = vmatprep.subr.mxu0 0.0
    %65 = vmatpush1.msra.mxu0 0.0
    %66 = vmatprep.subr.mxu0 0.0
    %67 = vmatpush1.msra.mxu0 0.0
    %68 = vmatprep.subr.mxu0 0.0
    %69 = vmatpush1.msra.mxu0 0.0
    %70 = vmatprep.subr.mxu0 0.0
    %71 = vmatpush1.msra.mxu0 0.0
    %72 = vmatprep.subr.mxu0 0.0
    %73 = vmatpush1.msra.mxu0 0.0
    %74 = vmatprep.subr.mxu0 0.0
    %75 = vmatpush1.msra.mxu0 0.0
    %76 = vmatprep.subr.mxu0 0.0
    %77 = vmatpush1.msra.mxu0 0.0
    %78 = vmatprep.subr.mxu0 0.0
    %79 = vmatpush1.msra.mxu0 0.0
    %80 = vmatprep.subr.mxu0 0.0
    %81 = vmatpush1.msra.mxu0 0.0
    %82 = vmatprep.subr.mxu0 0.0
    %83 = vmatpush1.msra.mxu0 0.0
    %84 = vmatprep.subr.mxu0 0.0
    %85 = vmatpush1.msra.mxu0 0.0
    %86 = vmatprep.subr.mxu0 0.0
    %87 = vmatpush1.msra.mxu0 0.0
    %88 = vmatprep.subr.mxu0 0.0
    %89 = vmatpush1.msra.mxu0 0.0
    %90 = vmatprep.subr.mxu0 0.0
    %91 = vmatpush1.msra.mxu0 0.0
    %92 = vmatprep.subr.mxu0 0.0
    %93 = vmatpush1.msra.mxu0 0.0
    %94 = vmatprep.subr.mxu0 0.0
    %95 = vmatpush1.msra.mxu0 0.0
    %96 = vmatprep.subr.mxu0 0.0
    %97 = vmatpush1.msra.mxu0 0.0
    %98 = vmatprep.subr.mxu0 0.0
    %99 = vmatpush1.msra.mxu0 0.0
    %100 = vmatprep.subr.mxu0 0.0
    %101 = vmatpush1.msra.mxu0 0.0
    %102 = vmatprep.subr.mxu0 0.0
    %103 = vmatpush1.msra.mxu0 0.0
    %104 = vmatprep.subr.mxu0 0.0
    %105 = vmatpush1.msra.mxu0 0.0
    %106 = vmatprep.subr.mxu0 0.0
    %107 = vmatpush1.msra.mxu0 0.0
    %108 = vmatprep.subr.mxu0 0.0
    %109 = vmatpush1.msra.mxu0 0.0
    %110 = vmatprep.subr.mxu0 0.0
    %111 = vmatpush1.msra.mxu0 0.0
    %112 = vmatprep.mubr.f32.mxu0 0.0
    %113 = vmatmul.mubr.f32.gmra.mrb[0].mxu0 %v43
    %v114 = vpop.f32.mrb[0].mxu0
    %v115 = vadd.f32 %v40, %v114
    %v116 = vpop.f32.mrb[0].mxu0
    %117 = vmatprep.mubr.f32.mxu0 0.0
    %118 = vmatmul.mubr.f32.gmra.mrb[0].mxu0 %v46
    %v119 = vpop.f32.mrb[0].mxu0
    %v120 = vadd.f32 %v40, %v119
    %v121 = vpop.f32.mrb[0].mxu0
    %122 = vdwg.mxu0
    %v123 = vmax.f32 %v115, 0.0
    %v124 = vmax.f32 %v120, 0.0
    %v125 = vld [vmem:[#allocation2 + $0x10] sm:$0xff]
    %v126 = vld [vmem:[#allocation2 + $0x18] sm:$0xff]
    %v127 = vld [vmem:[#allocation2 + $0x20] sm:$0xff]
    %v128 = vld [vmem:[#allocation2 + $0x28] sm:$0xff]
    %v129 = vlaneseq
    %v130 = vshrl.u32 %v129, 7
    %v131 = vsub.s32 1, %v130
    %v132 = vrot.slane %v32, %v131
    %vm133 = vcmask 261120
    %v135 = vsel %vm133, %v123, 0
    %v138 = vsel %vm133, %v124, 0
    %140 = vmatprep.subr.mxu0 0.0
    %141 = vmatpush1.msra.mxu0 %v125
    %142 = vmatprep.subr.mxu0 0.0
    %143 = vmatpush1.msra.mxu0 %v126
    %144 = vmatprep.subr.mxu0 0.0
    %145 = vmatpush1.msra.mxu0 %v127
    %146 = vmatprep.subr.mxu0 0.0
    %147 = vmatpush1.msra.mxu0 %v128
    %148 = vmatprep.subr.mxu0 0.0
    %149 = vmatpush1.msra.mxu0 0.0
    %150 = vmatprep.subr.mxu0 0.0
    %151 = vmatpush1.msra.mxu0 0.0
    %152 = vmatprep.subr.mxu0 0.0
    %153 = vmatpush1.msra.mxu0 0.0
    %154 = vmatprep.subr.mxu0 0.0
    %155 = vmatpush1.msra.mxu0 0.0
    %156 = vmatprep.subr.mxu0 0.0
    %157 = vmatpush1.msra.mxu0 0.0
    %158 = vmatprep.subr.mxu0 0.0
    %159 = vmatpush1.msra.mxu0 0.0
    %160 = vmatprep.subr.mxu0 0.0
    %161 = vmatpush1.msra.mxu0 0.0
    %162 = vmatprep.subr.mxu0 0.0
    %163 = vmatpush1.msra.mxu0 0.0
    %164 = vmatprep.subr.mxu0 0.0
    %165 = vmatpush1.msra.mxu0 0.0
    %166 = vmatprep.subr.mxu0 0.0
    %167 = vmatpush1.msra.mxu0 0.0
    %168 = vmatprep.subr.mxu0 0.0
    %169 = vmatpush1.msra.mxu0 0.0
    %170 = vmatprep.subr.mxu0 0.0
    %171 = vmatpush1.msra.mxu0 0.0
    %172 = vmatprep.subr.mxu0 0.0
    %173 = vmatpush1.msra.mxu0 0.0
    %174 = vmatprep.subr.mxu0 0.0
    %175 = vmatpush1.msra.mxu0 0.0
    %176 = vmatprep.subr.mxu0 0.0
    %177 = vmatpush1.msra.mxu0 0.0
    %178 = vmatprep.subr.mxu0 0.0
    %179 = vmatpush1.msra.mxu0 0.0
    %180 = vmatprep.subr.mxu0 0.0
    %181 = vmatpush1.msra.mxu0 0.0
    %182 = vmatprep.subr.mxu0 0.0
    %183 = vmatpush1.msra.mxu0 0.0
    %184 = vmatprep.subr.mxu0 0.0
    %185 = vmatpush1.msra.mxu0 0.0
    %186 = vmatprep.subr.mxu0 0.0
    %187 = vmatpush1.msra.mxu0 0.0
    %188 = vmatprep.subr.mxu0 0.0
    %189 = vmatpush1.msra.mxu0 0.0
    %190 = vmatprep.subr.mxu0 0.0
    %191 = vmatpush1.msra.mxu0 0.0
    %192 = vmatprep.subr.mxu0 0.0
    %193 = vmatpush1.msra.mxu0 0.0
    %194 = vmatprep.subr.mxu0 0.0
    %195 = vmatpush1.msra.mxu0 0.0
    %196 = vmatprep.subr.mxu0 0.0
    %197 = vmatpush1.msra.mxu0 0.0
    %198 = vmatprep.subr.mxu0 0.0
    %199 = vmatpush1.msra.mxu0 0.0
    %200 = vmatprep.subr.mxu0 0.0
    %201 = vmatpush1.msra.mxu0 0.0
    %202 = vmatprep.subr.mxu0 0.0
    %203 = vmatpush1.msra.mxu0 0.0
    %204 = vmatprep.mubr.f32.mxu0 0.0
    %205 = vmatmul.mubr.f32.gmra.mrb[0].mxu0 %v135
    %v206 = vpop.f32.mrb[0].mxu0
    %v207 = vadd.f32 %v132, %v206
    %v208 = vpop.f32.mrb[0].mxu0
    %209 = vmatprep.mubr.f32.mxu0 0.0
    %210 = vmatmul.mubr.f32.gmra.mrb[0].mxu0 %v138
    %v211 = vpop.f32.mrb[0].mxu0
    %v212 = vadd.f32 %v132, %v211
    %v213 = vpop.f32.mrb[0].mxu0
    %214 = vdwg.mxu0
    %v215 = vmax.f32 %v207, 0.0
    %v216 = vmax.f32 %v212, 0.0
    %v217 = vld [vmem:[#allocation2 + $0x30] sm:$0xff]
    %v218 = vld [vmem:[#allocation2 + $0x38] sm:$0xff]
    %v219 = vld [vmem:[#allocation2 + $0x40] sm:$0xff]
    %v220 = vld [vmem:[#allocation2 + $0x48] sm:$0xff]
    %v221 = vlaneseq
    %v222 = vshrl.u32 %v221, 7
    %v223 = vsub.s32 2, %v222
    %v224 = vrot.slane %v32, %v223
    %v226 = vsel %vm133, %v215, 0
    %v229 = vsel %vm133, %v216, 0
    %231 = vmatprep.subr.mxu0 0.0
    %232 = vmatpush1.msra.mxu0 %v217
    %233 = vmatprep.subr.mxu0 0.0
    %234 = vmatpush1.msra.mxu0 %v218
    %235 = vmatprep.subr.mxu0 0.0
    %236 = vmatpush1.msra.mxu0 %v219
    %237 = vmatprep.subr.mxu0 0.0
    %238 = vmatpush1.msra.mxu0 %v220
    %239 = vmatprep.subr.mxu0 0.0
    %240 = vmatpush1.msra.mxu0 0.0
    %241 = vmatprep.subr.mxu0 0.0
    %242 = vmatpush1.msra.mxu0 0.0
    %243 = vmatprep.subr.mxu0 0.0
    %244 = vmatpush1.msra.mxu0 0.0
    %245 = vmatprep.subr.mxu0 0.0
    %246 = vmatpush1.msra.mxu0 0.0
    %247 = vmatprep.subr.mxu0 0.0
    %248 = vmatpush1.msra.mxu0 0.0
    %249 = vmatprep.subr.mxu0 0.0
    %250 = vmatpush1.msra.mxu0 0.0
    %251 = vmatprep.subr.mxu0 0.0
    %252 = vmatpush1.msra.mxu0 0.0
    %253 = vmatprep.subr.mxu0 0.0
    %254 = vmatpush1.msra.mxu0 0.0
    %255 = vmatprep.subr.mxu0 0.0
    %256 = vmatpush1.msra.mxu0 0.0
    %257 = vmatprep.subr.mxu0 0.0
    %258 = vmatpush1.msra.mxu0 0.0
    %259 = vmatprep.subr.mxu0 0.0
    %260 = vmatpush1.msra.mxu0 0.0
    %261 = vmatprep.subr.mxu0 0.0
    %262 = vmatpush1.msra.mxu0 0.0
    %263 = vmatprep.subr.mxu0 0.0
    %264 = vmatpush1.msra.mxu0 0.0
    %265 = vmatprep.subr.mxu0 0.0
    %266 = vmatpush1.msra.mxu0 0.0
    %267 = vmatprep.subr.mxu0 0.0
    %268 = vmatpush1.msra.mxu0 0.0
    %269 = vmatprep.subr.mxu0 0.0
    %270 = vmatpush1.msra.mxu0 0.0
    %271 = vmatprep.subr.mxu0 0.0
    %272 = vmatpush1.msra.mxu0 0.0
    %273 = vmatprep.subr.mxu0 0.0
    %274 = vmatpush1.msra.mxu0 0.0
    %275 = vmatprep.subr.mxu0 0.0
    %276 = vmatpush1.msra.mxu0 0.0
    %277 = vmatprep.subr.mxu0 0.0
    %278 = vmatpush1.msra.mxu0 0.0
    %279 = vmatprep.subr.mxu0 0.0
    %280 = vmatpush1.msra.mxu0 0.0
    %281 = vmatprep.subr.mxu0 0.0
    %282 = vmatpush1.msra.mxu0 0.0
    %283 = vmatprep.subr.mxu0 0.0
    %284 = vmatpush1.msra.mxu0 0.0
    %285 = vmatprep.subr.mxu0 0.0
    %286 = vmatpush1.msra.mxu0 0.0
    %287 = vmatprep.subr.mxu0 0.0
    %288 = vmatpush1.msra.mxu0 0.0
    %289 = vmatprep.subr.mxu0 0.0
    %290 = vmatpush1.msra.mxu0 0.0
    %291 = vmatprep.subr.mxu0 0.0
    %292 = vmatpush1.msra.mxu0 0.0
    %293 = vmatprep.subr.mxu0 0.0
    %294 = vmatpush1.msra.mxu0 0.0
    %295 = vmatprep.mubr.f32.mxu0 0.0
    %296 = vmatmul.mubr.f32.gmra.mrb[0].mxu0 %v226
    %v297 = vpop.f32.mrb[0].mxu0
    %v298 = vadd.f32 %v224, %v297
    %v299 = vpop.f32.mrb[0].mxu0
    %300 = vmatprep.mubr.f32.mxu0 0.0
    %301 = vmatmul.mubr.f32.gmra.mrb[0].mxu0 %v229
    %v302 = vpop.f32.mrb[0].mxu0
    %v303 = vadd.f32 %v224, %v302
    %v304 = vpop.f32.mrb[0].mxu0
    %305 = vdwg.mxu0
    %v306 = vld [vmem:[#allocation2 + $0x50] sm:$0xff]
    %v307 = vld [vmem:[%s1] sm:$0xff]
    %v308 = vld [vmem:[%s1 + $0x8] sm:$0xff]
    %v309 = vld [vmem:[#allocation2 + $0x58] sm:$0xff]
    %vm310 = vcmask 64512
    %v312 = vsel %vm310, %v307, 0
    %v315 = vsel %vm310, %v308, 0
    %317 = vmatprep.subr.mxu0 0.0
    %318 = vmatpush1.msra.mxu0 %v309
    %319 = vmatprep.subr.mxu0 0.0
    %320 = vmatpush1.msra.mxu0 0.0
    %321 = vmatprep.subr.mxu0 0.0
    %322 = vmatpush1.msra.mxu0 0.0
    %323 = vmatprep.subr.mxu0 0.0
    %324 = vmatpush1.msra.mxu0 0.0
    %325 = vmatprep.subr.mxu0 0.0
    %326 = vmatpush1.msra.mxu0 0.0
    %327 = vmatprep.subr.mxu0 0.0
    %328 = vmatpush1.msra.mxu0 0.0
    %329 = vmatprep.subr.mxu0 0.0
    %330 = vmatpush1.msra.mxu0 0.0
    %331 = vmatprep.subr.mxu0 0.0
    %332 = vmatpush1.msra.mxu0 0.0
    %333 = vmatprep.subr.mxu0 0.0
    %334 = vmatpush1.msra.mxu0 0.0
    %335 = vmatprep.subr.mxu0 0.0
    %336 = vmatpush1.msra.mxu0 0.0
    %337 = vmatprep.subr.mxu0 0.0
    %338 = vmatpush1.msra.mxu0 0.0
    %339 = vmatprep.subr.mxu0 0.0
    %340 = vmatpush1.msra.mxu0 0.0
    %341 = vmatprep.subr.mxu0 0.0
    %342 = vmatpush1.msra.mxu0 0.0
    %343 = vmatprep.subr.mxu0 0.0
    %344 = vmatpush1.msra.mxu0 0.0
    %345 = vmatprep.subr.mxu0 0.0
    %346 = vmatpush1.msra.mxu0 0.0
    %347 = vmatprep.subr.mxu0 0.0
    %348 = vmatpush1.msra.mxu0 0.0
    %349 = vmatprep.subr.mxu0 0.0
    %350 = vmatpush1.msra.mxu0 0.0
    %351 = vmatprep.subr.mxu0 0.0
    %352 = vmatpush1.msra.mxu0 0.0
    %353 = vmatprep.subr.mxu0 0.0
    %354 = vmatpush1.msra.mxu0 0.0
    %355 = vmatprep.subr.mxu0 0.0
    %356 = vmatpush1.msra.mxu0 0.0
    %357 = vmatprep.subr.mxu0 0.0
    %358 = vmatpush1.msra.mxu0 0.0
    %359 = vmatprep.subr.mxu0 0.0
    %360 = vmatpush1.msra.mxu0 0.0
    %361 = vmatprep.subr.mxu0 0.0
    %362 = vmatpush1.msra.mxu0 0.0
    %363 = vmatprep.subr.mxu0 0.0
    %364 = vmatpush1.msra.mxu0 0.0
    %365 = vmatprep.subr.mxu0 0.0
    %366 = vmatpush1.msra.mxu0 0.0
    %367 = vmatprep.subr.mxu0 0.0
    %368 = vmatpush1.msra.mxu0 0.0
    %369 = vmatprep.subr.mxu0 0.0
    %370 = vmatpush1.msra.mxu0 0.0
    %371 = vmatprep.subr.mxu0 0.0
    %372 = vmatpush1.msra.mxu0 0.0
    %373 = vmatprep.subr.mxu0 0.0
    %374 = vmatpush1.msra.mxu0 0.0
    %375 = vmatprep.subr.mxu0 0.0
    %376 = vmatpush1.msra.mxu0 0.0
    %377 = vmatprep.subr.mxu0 0.0
    %378 = vmatpush1.msra.mxu0 0.0
    %379 = vmatprep.subr.mxu0 0.0
    %380 = vmatpush1.msra.mxu0 0.0
    %381 = vmatprep.mubr.f32.mxu0 0.0
    %382 = vmatmul.mubr.f32.gmra.mrb[0].mxu0 %v312
    %v383 = vpop.f32.mrb[0].mxu0
    %v384 = vadd.f32 0.0, %v383
    %v385 = vpop.f32.mrb[0].mxu0
    %386 = vmatprep.mubr.f32.mxu0 0.0
    %387 = vmatmul.mubr.f32.gmra.mrb[0].mxu0 %v315
    %v388 = vpop.f32.mrb[0].mxu0
    %v389 = vadd.f32 0.0, %v388
    %v390 = vpop.f32.mrb[0].mxu0
    %391 = vdwg.mxu0
    %v393 = vsel %vm310, %v298, 0
    %v396 = vsel %vm310, %v303, 0
    %398 = vmatprep.subr.mxu0 0.0
    %399 = vmatpush1.msra.mxu0 %v306
    %400 = vmatprep.subr.mxu0 0.0
    %401 = vmatpush1.msra.mxu0 0.0
    %402 = vmatprep.subr.mxu0 0.0
    %403 = vmatpush1.msra.mxu0 0.0
    %404 = vmatprep.subr.mxu0 0.0
    %405 = vmatpush1.msra.mxu0 0.0
    %406 = vmatprep.subr.mxu0 0.0
    %407 = vmatpush1.msra.mxu0 0.0
    %408 = vmatprep.subr.mxu0 0.0
    %409 = vmatpush1.msra.mxu0 0.0
    %410 = vmatprep.subr.mxu0 0.0
    %411 = vmatpush1.msra.mxu0 0.0
    %412 = vmatprep.subr.mxu0 0.0
    %413 = vmatpush1.msra.mxu0 0.0
    %414 = vmatprep.subr.mxu0 0.0
    %415 = vmatpush1.msra.mxu0 0.0
    %416 = vmatprep.subr.mxu0 0.0
    %417 = vmatpush1.msra.mxu0 0.0
    %418 = vmatprep.subr.mxu0 0.0
    %419 = vmatpush1.msra.mxu0 0.0
    %420 = vmatprep.subr.mxu0 0.0
    %421 = vmatpush1.msra.mxu0 0.0
    %422 = vmatprep.subr.mxu0 0.0
    %423 = vmatpush1.msra.mxu0 0.0
    %424 = vmatprep.subr.mxu0 0.0
    %425 = vmatpush1.msra.mxu0 0.0
    %426 = vmatprep.subr.mxu0 0.0
    %427 = vmatpush1.msra.mxu0 0.0
    %428 = vmatprep.subr.mxu0 0.0
    %429 = vmatpush1.msra.mxu0 0.0
    %430 = vmatprep.subr.mxu0 0.0
    %431 = vmatpush1.msra.mxu0 0.0
    %432 = vmatprep.subr.mxu0 0.0
    %433 = vmatpush1.msra.mxu0 0.0
    %434 = vmatprep.subr.mxu0 0.0
    %435 = vmatpush1.msra.mxu0 0.0
    %436 = vmatprep.subr.mxu0 0.0
    %437 = vmatpush1.msra.mxu0 0.0
    %438 = vmatprep.subr.mxu0 0.0
    %439 = vmatpush1.msra.mxu0 0.0
    %440 = vmatprep.subr.mxu0 0.0
    %441 = vmatpush1.msra.mxu0 0.0
    %442 = vmatprep.subr.mxu0 0.0
    %443 = vmatpush1.msra.mxu0 0.0
    %444 = vmatprep.subr.mxu0 0.0
    %445 = vmatpush1.msra.mxu0 0.0
    %446 = vmatprep.subr.mxu0 0.0
    %447 = vmatpush1.msra.mxu0 0.0
    %448 = vmatprep.subr.mxu0 0.0
    %449 = vmatpush1.msra.mxu0 0.0
    %450 = vmatprep.subr.mxu0 0.0
    %451 = vmatpush1.msra.mxu0 0.0
    %452 = vmatprep.subr.mxu0 0.0
    %453 = vmatpush1.msra.mxu0 0.0
    %454 = vmatprep.subr.mxu0 0.0
    %455 = vmatpush1.msra.mxu0 0.0
    %456 = vmatprep.subr.mxu0 0.0
    %457 = vmatpush1.msra.mxu0 0.0
    %458 = vmatprep.subr.mxu0 0.0
    %459 = vmatpush1.msra.mxu0 0.0
    %460 = vmatprep.subr.mxu0 0.0
    %461 = vmatpush1.msra.mxu0 0.0
    %462 = vmatprep.mubr.f32.mxu0 0.0
    %463 = vmatmul.mubr.f32.gmra.mrb[0].mxu0 %v393
    %v464 = vpop.f32.mrb[0].mxu0
    %v465 = vadd.f32 %v384, %v464
    %v466 = vpop.f32.mrb[0].mxu0
    %467 = vmatprep.mubr.f32.mxu0 0.0
    %468 = vmatmul.mubr.f32.gmra.mrb[0].mxu0 %v396
    %v469 = vpop.f32.mrb[0].mxu0
    %v470 = vadd.f32 %v389, %v469
    %v471 = vpop.f32.mrb[0].mxu0
    %472 = vdwg.mxu0
    %v473 = vlaneseq
    %v474 = vshrl.u32 %v473, 7
    %v475 = vsub.s32 3, %v474
    %v476 = vrot.slane %v32, %v475
    %v477 = vadd.f32 %v465, %v476
    %v478 = vadd.f32 %v470, %v476
    %v479 = vld [vmem:[#allocation2 + $0x60] sm:$0xff]
    %v480 = vld [vmem:[#allocation2 + $0x68] sm:$0xff]
    %v481 = vld [vmem:[#allocation2 + $0x70] sm:$0xff]
    %v482 = vld [vmem:[#allocation2 + $0x78] sm:$0xff]
    %v484 = vsel %vm133, 0.0, 0
    %486 = vmatprep.subr.mxu0 0.0
    %487 = vmatpush1.msra.mxu0 %v479
    %488 = vmatprep.subr.mxu0 0.0
    %489 = vmatpush1.msra.mxu0 %v480
    %490 = vmatprep.subr.mxu0 0.0
    %491 = vmatpush1.msra.mxu0 %v481
    %492 = vmatprep.subr.mxu0 0.0
    %493 = vmatpush1.msra.mxu0 %v482
    %494 = vmatprep.subr.mxu0 0.0
    %495 = vmatpush1.msra.mxu0 0.0
    %496 = vmatprep.subr.mxu0 0.0
    %497 = vmatpush1.msra.mxu0 0.0
    %498 = vmatprep.subr.mxu0 0.0
    %499 = vmatpush1.msra.mxu0 0.0
    %500 = vmatprep.subr.mxu0 0.0
    %501 = vmatpush1.msra.mxu0 0.0
    %502 = vmatprep.subr.mxu0 0.0
    %503 = vmatpush1.msra.mxu0 0.0
    %504 = vmatprep.subr.mxu0 0.0
    %505 = vmatpush1.msra.mxu0 0.0
    %506 = vmatprep.subr.mxu0 0.0
    %507 = vmatpush1.msra.mxu0 0.0
    %508 = vmatprep.subr.mxu0 0.0
    %509 = vmatpush1.msra.mxu0 0.0
    %510 = vmatprep.subr.mxu0 0.0
    %511 = vmatpush1.msra.mxu0 0.0
    %512 = vmatprep.subr.mxu0 0.0
    %513 = vmatpush1.msra.mxu0 0.0
    %514 = vmatprep.subr.mxu0 0.0
    %515 = vmatpush1.msra.mxu0 0.0
    %516 = vmatprep.subr.mxu0 0.0
    %517 = vmatpush1.msra.mxu0 0.0
    %518 = vmatprep.subr.mxu0 0.0
    %519 = vmatpush1.msra.mxu0 0.0
    %520 = vmatprep.subr.mxu0 0.0
    %521 = vmatpush1.msra.mxu0 0.0
    %522 = vmatprep.subr.mxu0 0.0
    %523 = vmatpush1.msra.mxu0 0.0
    %524 = vmatprep.subr.mxu0 0.0
    %525 = vmatpush1.msra.mxu0 0.0
    %526 = vmatprep.subr.mxu0 0.0
    %527 = vmatpush1.msra.mxu0 0.0
    %528 = vmatprep.subr.mxu0 0.0
    %529 = vmatpush1.msra.mxu0 0.0
    %530 = vmatprep.subr.mxu0 0.0
    %531 = vmatpush1.msra.mxu0 0.0
    %532 = vmatprep.subr.mxu0 0.0
    %533 = vmatpush1.msra.mxu0 0.0
    %534 = vmatprep.subr.mxu0 0.0
    %535 = vmatpush1.msra.mxu0 0.0
    %536 = vmatprep.subr.mxu0 0.0
    %537 = vmatpush1.msra.mxu0 0.0
    %538 = vmatprep.subr.mxu0 0.0
    %539 = vmatpush1.msra.mxu0 0.0
    %540 = vmatprep.subr.mxu0 0.0
    %541 = vmatpush1.msra.mxu0 0.0
    %542 = vmatprep.subr.mxu0 0.0
    %543 = vmatpush1.msra.mxu0 0.0
    %544 = vmatprep.subr.mxu0 0.0
    %545 = vmatpush1.msra.mxu0 0.0
    %546 = vmatprep.subr.mxu0 0.0
    %547 = vmatpush1.msra.mxu0 0.0
    %548 = vmatprep.subr.mxu0 0.0
    %549 = vmatpush1.msra.mxu0 0.0
    %550 = vmatprep.mubr.f32.mxu0 0.0
    %551 = vmatmul.mubr.f32.gmra.mrb[0].mxu0 %v484
    %v552 = vpop.f32.mrb[0].mxu0
    %v553 = vadd.f32 0.0, %v552
    %v554 = vpop.f32.mrb[0].mxu0
    %555 = vdwg.mxu0
    %v556 = vadd.f32 %v477, %v553
    %v557 = vxor.u32 %v556, 2147483648
    %v558 = vmul.f32 %v557, 1.442695
    %v559 = vpow.pop %v558
    %v560 = vadd.f32 %v559, 1.0
    %v561 = vrcp.pop %v560
    %v562 = vmul.f32 1.0, %v561
    %v563 = vtanh.pop %v556
    %v564 = vmul.f32 %v562, 0.0
    %566 = vrot.lane.b32.xlu0 %v563, 64
    %v567 = vpop.permute.xlu0 %566
    %v569 = vmul.f32 %v562, %v567
    %571 = vrot.lane.b32.xlu0 %v569, 32
    %v572 = vpop.permute.xlu0 %571
    %v574 = vadd.f32 %v564, %v572
    %v575 = vtanh.pop %v574
    %577 = vrot.lane.b32.xlu0 %v575, 64
    %v578 = vpop.permute.xlu0 %577
    %v580 = vmul.f32 %v562, %v578
    %582 = vrot.lane.b32.xlu0 %v580, 32
    %v583 = vpop.permute.xlu0 %582
    %v584 = vsel %vm133, %v583, 0
    %586 = vmatprep.subr.mxu0 0.0
    %587 = vmatpush1.msra.mxu0 %v479
    %588 = vmatprep.subr.mxu0 0.0
    %589 = vmatpush1.msra.mxu0 %v480
    %590 = vmatprep.subr.mxu0 0.0
    %591 = vmatpush1.msra.mxu0 %v481
    %592 = vmatprep.subr.mxu0 0.0
    %593 = vmatpush1.msra.mxu0 %v482
    %594 = vmatprep.subr.mxu0 0.0
    %595 = vmatpush1.msra.mxu0 0.0
    %596 = vmatprep.subr.mxu0 0.0
    %597 = vmatpush1.msra.mxu0 0.0
    %598 = vmatprep.subr.mxu0 0.0
    %599 = vmatpush1.msra.mxu0 0.0
    %600 = vmatprep.subr.mxu0 0.0
    %601 = vmatpush1.msra.mxu0 0.0
    %602 = vmatprep.subr.mxu0 0.0
    %603 = vmatpush1.msra.mxu0 0.0
    %604 = vmatprep.subr.mxu0 0.0
    %605 = vmatpush1.msra.mxu0 0.0
    %606 = vmatprep.subr.mxu0 0.0
    %607 = vmatpush1.msra.mxu0 0.0
    %608 = vmatprep.subr.mxu0 0.0
    %609 = vmatpush1.msra.mxu0 0.0
    %610 = vmatprep.subr.mxu0 0.0
    %611 = vmatpush1.msra.mxu0 0.0
    %612 = vmatprep.subr.mxu0 0.0
    %613 = vmatpush1.msra.mxu0 0.0
    %614 = vmatprep.subr.mxu0 0.0
    %615 = vmatpush1.msra.mxu0 0.0
    %616 = vmatprep.subr.mxu0 0.0
    %617 = vmatpush1.msra.mxu0 0.0
    %618 = vmatprep.subr.mxu0 0.0
    %619 = vmatpush1.msra.mxu0 0.0
    %620 = vmatprep.subr.mxu0 0.0
    %621 = vmatpush1.msra.mxu0 0.0
    %622 = vmatprep.subr.mxu0 0.0
    %623 = vmatpush1.msra.mxu0 0.0
    %624 = vmatprep.subr.mxu0 0.0
    %625 = vmatpush1.msra.mxu0 0.0
    %626 = vmatprep.subr.mxu0 0.0
    %627 = vmatpush1.msra.mxu0 0.0
    %628 = vmatprep.subr.mxu0 0.0
    %629 = vmatpush1.msra.mxu0 0.0
    %630 = vmatprep.subr.mxu0 0.0
    %631 = vmatpush1.msra.mxu0 0.0
    %632 = vmatprep.subr.mxu0 0.0
    %633 = vmatpush1.msra.mxu0 0.0
    %634 = vmatprep.subr.mxu0 0.0
    %635 = vmatpush1.msra.mxu0 0.0
    %636 = vmatprep.subr.mxu0 0.0
    %637 = vmatpush1.msra.mxu0 0.0
    %638 = vmatprep.subr.mxu0 0.0
    %639 = vmatpush1.msra.mxu0 0.0
    %640 = vmatprep.subr.mxu0 0.0
    %641 = vmatpush1.msra.mxu0 0.0
    %642 = vmatprep.subr.mxu0 0.0
    %643 = vmatpush1.msra.mxu0 0.0
    %644 = vmatprep.subr.mxu0 0.0
    %645 = vmatpush1.msra.mxu0 0.0
    %646 = vmatprep.subr.mxu0 0.0
    %647 = vmatpush1.msra.mxu0 0.0
    %648 = vmatprep.subr.mxu0 0.0
    %649 = vmatpush1.msra.mxu0 0.0
    %650 = vmatprep.mubr.f32.mxu0 0.0
    %651 = vmatmul.mubr.f32.gmra.mrb[0].mxu0 %v584
    %v652 = vpop.f32.mrb[0].mxu0
    %v653 = vadd.f32 0.0, %v652
    %v654 = vpop.f32.mrb[0].mxu0
    %655 = vdwg.mxu0
    %v657 = vrot.slane %v653, 6
    %v659 = vadd.f32 %v477, %v657
    %v660 = vxor.u32 %v659, 2147483648
    %v661 = vmul.f32 %v660, 1.442695
    %v662 = vpow.pop %v661
    %v663 = vadd.f32 %v662, 1.0
    %v664 = vrcp.pop %v663
    %v665 = vmul.f32 1.0, %v664
    %v666 = vtanh.pop %v659
    %v668 = vrot.slane %v574, 6
    %v670 = vmul.f32 %v665, %v668
    %672 = vrot.lane.b32.xlu0 %v666, 64
    %v673 = vpop.permute.xlu0 %672
    %v675 = vmul.f32 %v665, %v673
    %677 = vrot.lane.b32.xlu0 %v675, 32
    %v678 = vpop.permute.xlu0 %677
    %v680 = vadd.f32 %v670, %v678
    %v681 = vtanh.pop %v680
    %683 = vrot.lane.b32.xlu0 %v681, 64
    %v684 = vpop.permute.xlu0 %683
    %v686 = vmul.f32 %v665, %v684
    %v688 = vrot.slane %v686, 2
    %689 = vrot.lane.b32.xlu0 %v688, 32
    %v690 = vpop.permute.xlu0 %689
    %v691 = vsel %vm133, %v690, 0
    %693 = vmatprep.subr.mxu0 0.0
    %694 = vmatpush1.msra.mxu0 %v479
    %695 = vmatprep.subr.mxu0 0.0
    %696 = vmatpush1.msra.mxu0 %v480
    %697 = vmatprep.subr.mxu0 0.0
    %698 = vmatpush1.msra.mxu0 %v481
    %699 = vmatprep.subr.mxu0 0.0
    %700 = vmatpush1.msra.mxu0 %v482
    %701 = vmatprep.subr.mxu0 0.0
    %702 = vmatpush1.msra.mxu0 0.0
    %703 = vmatprep.subr.mxu0 0.0
    %704 = vmatpush1.msra.mxu0 0.0
    %705 = vmatprep.subr.mxu0 0.0
    %706 = vmatpush1.msra.mxu0 0.0
    %707 = vmatprep.subr.mxu0 0.0
    %708 = vmatpush1.msra.mxu0 0.0
    %709 = vmatprep.subr.mxu0 0.0
    %710 = vmatpush1.msra.mxu0 0.0
    %711 = vmatprep.subr.mxu0 0.0
    %712 = vmatpush1.msra.mxu0 0.0
    %713 = vmatprep.subr.mxu0 0.0
    %714 = vmatpush1.msra.mxu0 0.0
    %715 = vmatprep.subr.mxu0 0.0
    %716 = vmatpush1.msra.mxu0 0.0
    %717 = vmatprep.subr.mxu0 0.0
    %718 = vmatpush1.msra.mxu0 0.0
    %719 = vmatprep.subr.mxu0 0.0
    %720 = vmatpush1.msra.mxu0 0.0
    %721 = vmatprep.subr.mxu0 0.0
    %722 = vmatpush1.msra.mxu0 0.0
    %723 = vmatprep.subr.mxu0 0.0
    %724 = vmatpush1.msra.mxu0 0.0
    %725 = vmatprep.subr.mxu0 0.0
    %726 = vmatpush1.msra.mxu0 0.0
    %727 = vmatprep.subr.mxu0 0.0
    %728 = vmatpush1.msra.mxu0 0.0
    %729 = vmatprep.subr.mxu0 0.0
    %730 = vmatpush1.msra.mxu0 0.0
    %731 = vmatprep.subr.mxu0 0.0
    %732 = vmatpush1.msra.mxu0 0.0
    %733 = vmatprep.subr.mxu0 0.0
    %734 = vmatpush1.msra.mxu0 0.0
    %735 = vmatprep.subr.mxu0 0.0
    %736 = vmatpush1.msra.mxu0 0.0
    %737 = vmatprep.subr.mxu0 0.0
    %738 = vmatpush1.msra.mxu0 0.0
    %739 = vmatprep.subr.mxu0 0.0
    %740 = vmatpush1.msra.mxu0 0.0
    %741 = vmatprep.subr.mxu0 0.0
    %742 = vmatpush1.msra.mxu0 0.0
    %743 = vmatprep.subr.mxu0 0.0
    %744 = vmatpush1.msra.mxu0 0.0
    %745 = vmatprep.subr.mxu0 0.0
    %746 = vmatpush1.msra.mxu0 0.0
    %747 = vmatprep.subr.mxu0 0.0
    %748 = vmatpush1.msra.mxu0 0.0
    %749 = vmatprep.subr.mxu0 0.0
    %750 = vmatpush1.msra.mxu0 0.0
    %751 = vmatprep.subr.mxu0 0.0
    %752 = vmatpush1.msra.mxu0 0.0
    %753 = vmatprep.subr.mxu0 0.0
    %754 = vmatpush1.msra.mxu0 0.0
    %755 = vmatprep.subr.mxu0 0.0
    %756 = vmatpush1.msra.mxu0 0.0
    %757 = vmatprep.mubr.f32.mxu0 0.0
    %758 = vmatmul.mubr.f32.gmra.mrb[0].mxu0 %v691
    %v759 = vpop.f32.mrb[0].mxu0
    %v760 = vadd.f32 0.0, %v759
    %v761 = vpop.f32.mrb[0].mxu0
    %762 = vdwg.mxu0
    %v764 = vrot.slane %v760, 4
    %v766 = vadd.f32 %v477, %v764
    %v767 = vxor.u32 %v766, 2147483648
    %v768 = vmul.f32 %v767, 1.442695
    %v769 = vpow.pop %v768
    %v770 = vadd.f32 %v769, 1.0
    %v771 = vrcp.pop %v770
    %v772 = vmul.f32 1.0, %v771
    %v773 = vtanh.pop %v766
    %v775 = vrot.slane %v680, 6
    %v777 = vmul.f32 %v772, %v775
    %779 = vrot.lane.b32.xlu0 %v773, 64
    %v780 = vpop.permute.xlu0 %779
    %v782 = vmul.f32 %v772, %v780
    %784 = vrot.lane.b32.xlu0 %v782, 32
    %v785 = vpop.permute.xlu0 %784
    %v787 = vadd.f32 %v777, %v785
    %v788 = vtanh.pop %v787
    %790 = vrot.lane.b32.xlu0 %v788, 64
    %v791 = vpop.permute.xlu0 %790
    %v793 = vmul.f32 %v772, %v791
    %v795 = vrot.slane %v793, 4
    %796 = vrot.lane.b32.xlu0 %v795, 32
    %v797 = vpop.permute.xlu0 %796
    %v798 = vsel %vm133, %v797, 0
    %800 = vmatprep.subr.mxu0 0.0
    %801 = vmatpush1.msra.mxu0 %v479
    %802 = vmatprep.subr.mxu0 0.0
    %803 = vmatpush1.msra.mxu0 %v480
    %804 = vmatprep.subr.mxu0 0.0
    %805 = vmatpush1.msra.mxu0 %v481
    %806 = vmatprep.subr.mxu0 0.0
    %807 = vmatpush1.msra.mxu0 %v482
    %808 = vmatprep.subr.mxu0 0.0
    %809 = vmatpush1.msra.mxu0 0.0
    %810 = vmatprep.subr.mxu0 0.0
    %811 = vmatpush1.msra.mxu0 0.0
    %812 = vmatprep.subr.mxu0 0.0
    %813 = vmatpush1.msra.mxu0 0.0
    %814 = vmatprep.subr.mxu0 0.0
    %815 = vmatpush1.msra.mxu0 0.0
    %816 = vmatprep.subr.mxu0 0.0
    %817 = vmatpush1.msra.mxu0 0.0
    %818 = vmatprep.subr.mxu0 0.0
    %819 = vmatpush1.msra.mxu0 0.0
    %820 = vmatprep.subr.mxu0 0.0
    %821 = vmatpush1.msra.mxu0 0.0
    %822 = vmatprep.subr.mxu0 0.0
    %823 = vmatpush1.msra.mxu0 0.0
    %824 = vmatprep.subr.mxu0 0.0
    %825 = vmatpush1.msra.mxu0 0.0
    %826 = vmatprep.subr.mxu0 0.0
    %827 = vmatpush1.msra.mxu0 0.0
    %828 = vmatprep.subr.mxu0 0.0
    %829 = vmatpush1.msra.mxu0 0.0
    %830 = vmatprep.subr.mxu0 0.0
    %831 = vmatpush1.msra.mxu0 0.0
    %832 = vmatprep.subr.mxu0 0.0
    %833 = vmatpush1.msra.mxu0 0.0
    %834 = vmatprep.subr.mxu0 0.0
    %835 = vmatpush1.msra.mxu0 0.0
    %836 = vmatprep.subr.mxu0 0.0
    %837 = vmatpush1.msra.mxu0 0.0
    %838 = vmatprep.subr.mxu0 0.0
    %839 = vmatpush1.msra.mxu0 0.0
    %840 = vmatprep.subr.mxu0 0.0
    %841 = vmatpush1.msra.mxu0 0.0
    %842 = vmatprep.subr.mxu0 0.0
    %843 = vmatpush1.msra.mxu0 0.0
    %844 = vmatprep.subr.mxu0 0.0
    %845 = vmatpush1.msra.mxu0 0.0
    %846 = vmatprep.subr.mxu0 0.0
    %847 = vmatpush1.msra.mxu0 0.0
    %848 = vmatprep.subr.mxu0 0.0
    %849 = vmatpush1.msra.mxu0 0.0
    %850 = vmatprep.subr.mxu0 0.0
    %851 = vmatpush1.msra.mxu0 0.0
    %852 = vmatprep.subr.mxu0 0.0
    %853 = vmatpush1.msra.mxu0 0.0
    %854 = vmatprep.subr.mxu0 0.0
    %855 = vmatpush1.msra.mxu0 0.0
    %856 = vmatprep.subr.mxu0 0.0
    %857 = vmatpush1.msra.mxu0 0.0
    %858 = vmatprep.subr.mxu0 0.0
    %859 = vmatpush1.msra.mxu0 0.0
    %860 = vmatprep.subr.mxu0 0.0
    %861 = vmatpush1.msra.mxu0 0.0
    %862 = vmatprep.subr.mxu0 0.0
    %863 = vmatpush1.msra.mxu0 0.0
    %864 = vmatprep.mubr.f32.mxu0 0.0
    %865 = vmatmul.mubr.f32.gmra.mrb[0].mxu0 %v798
    %v866 = vpop.f32.mrb[0].mxu0
    %v867 = vadd.f32 0.0, %v866
    %v868 = vpop.f32.mrb[0].mxu0
    %869 = vdwg.mxu0
    %v871 = vrot.slane %v867, 2
    %v873 = vadd.f32 %v477, %v871
    %v874 = vxor.u32 %v873, 2147483648
    %v875 = vmul.f32 %v874, 1.442695
    %v876 = vpow.pop %v875
    %v877 = vadd.f32 %v876, 1.0
    %v878 = vrcp.pop %v877
    %v879 = vmul.f32 1.0, %v878
    %v880 = vtanh.pop %v873
    %v882 = vrot.slane %v787, 6
    %v884 = vmul.f32 %v879, %v882
    %886 = vrot.lane.b32.xlu0 %v880, 64
    %v887 = vpop.permute.xlu0 %886
    %v889 = vmul.f32 %v879, %v887
    %891 = vrot.lane.b32.xlu0 %v889, 32
    %v892 = vpop.permute.xlu0 %891
    %v894 = vadd.f32 %v884, %v892
    %v895 = vtanh.pop %v894
    %897 = vrot.lane.b32.xlu0 %v895, 64
    %v898 = vpop.permute.xlu0 %897
    %v900 = vmul.f32 %v879, %v898
    %v902 = vrot.slane %v900, 6
    %903 = vrot.lane.b32.xlu0 %v902, 32
    %v904 = vpop.permute.xlu0 %903
    %v905 = vsel %vm133, %v904, 0
    %907 = vmatprep.subr.mxu0 0.0
    %908 = vmatpush1.msra.mxu0 %v479
    %909 = vmatprep.subr.mxu0 0.0
    %910 = vmatpush1.msra.mxu0 %v480
    %911 = vmatprep.subr.mxu0 0.0
    %912 = vmatpush1.msra.mxu0 %v481
    %913 = vmatprep.subr.mxu0 0.0
    %914 = vmatpush1.msra.mxu0 %v482
    %915 = vmatprep.subr.mxu0 0.0
    %916 = vmatpush1.msra.mxu0 0.0
    %917 = vmatprep.subr.mxu0 0.0
    %918 = vmatpush1.msra.mxu0 0.0
    %919 = vmatprep.subr.mxu0 0.0
    %920 = vmatpush1.msra.mxu0 0.0
    %921 = vmatprep.subr.mxu0 0.0
    %922 = vmatpush1.msra.mxu0 0.0
    %923 = vmatprep.subr.mxu0 0.0
    %924 = vmatpush1.msra.mxu0 0.0
    %925 = vmatprep.subr.mxu0 0.0
    %926 = vmatpush1.msra.mxu0 0.0
    %927 = vmatprep.subr.mxu0 0.0
    %928 = vmatpush1.msra.mxu0 0.0
    %929 = vmatprep.subr.mxu0 0.0
    %930 = vmatpush1.msra.mxu0 0.0
    %931 = vmatprep.subr.mxu0 0.0
    %932 = vmatpush1.msra.mxu0 0.0
    %933 = vmatprep.subr.mxu0 0.0
    %934 = vmatpush1.msra.mxu0 0.0
    %935 = vmatprep.subr.mxu0 0.0
    %936 = vmatpush1.msra.mxu0 0.0
    %937 = vmatprep.subr.mxu0 0.0
    %938 = vmatpush1.msra.mxu0 0.0
    %939 = vmatprep.subr.mxu0 0.0
    %940 = vmatpush1.msra.mxu0 0.0
    %941 = vmatprep.subr.mxu0 0.0
    %942 = vmatpush1.msra.mxu0 0.0
    %943 = vmatprep.subr.mxu0 0.0
    %944 = vmatpush1.msra.mxu0 0.0
    %945 = vmatprep.subr.mxu0 0.0
    %946 = vmatpush1.msra.mxu0 0.0
    %947 = vmatprep.subr.mxu0 0.0
    %948 = vmatpush1.msra.mxu0 0.0
    %949 = vmatprep.subr.mxu0 0.0
    %950 = vmatpush1.msra.mxu0 0.0
    %951 = vmatprep.subr.mxu0 0.0
    %952 = vmatpush1.msra.mxu0 0.0
    %953 = vmatprep.subr.mxu0 0.0
    %954 = vmatpush1.msra.mxu0 0.0
    %955 = vmatprep.subr.mxu0 0.0
    %956 = vmatpush1.msra.mxu0 0.0
    %957 = vmatprep.subr.mxu0 0.0
    %958 = vmatpush1.msra.mxu0 0.0
    %959 = vmatprep.subr.mxu0 0.0
    %960 = vmatpush1.msra.mxu0 0.0
    %961 = vmatprep.subr.mxu0 0.0
    %962 = vmatpush1.msra.mxu0 0.0
    %963 = vmatprep.subr.mxu0 0.0
    %964 = vmatpush1.msra.mxu0 0.0
    %965 = vmatprep.subr.mxu0 0.0
    %966 = vmatpush1.msra.mxu0 0.0
    %967 = vmatprep.subr.mxu0 0.0
    %968 = vmatpush1.msra.mxu0 0.0
    %969 = vmatprep.subr.mxu0 0.0
    %970 = vmatpush1.msra.mxu0 0.0
    %971 = vmatprep.mubr.f32.mxu0 0.0
    %972 = vmatmul.mubr.f32.gmra.mrb[0].mxu0 %v905
    %v973 = vpop.f32.mrb[0].mxu0
    %v974 = vadd.f32 0.0, %v973
    %v975 = vpop.f32.mrb[0].mxu0
    %976 = vdwg.mxu0
    %v977 = vadd.f32 %v478, %v974
    %v978 = vxor.u32 %v977, 2147483648
    %v979 = vmul.f32 %v978, 1.442695
    %v980 = vpow.pop %v979
    %v981 = vadd.f32 %v980, 1.0
    %v982 = vrcp.pop %v981
    %v983 = vmul.f32 1.0, %v982
    %v984 = vtanh.pop %v977
    %v986 = vrot.slane %v894, 6
    %v988 = vmul.f32 %v983, %v986
    %990 = vrot.lane.b32.xlu0 %v984, 64
    %v991 = vpop.permute.xlu0 %990
    %v993 = vmul.f32 %v983, %v991
    %995 = vrot.lane.b32.xlu0 %v993, 32
    %v996 = vpop.permute.xlu0 %995
    %v998 = vadd.f32 %v988, %v996
    %v999 = vtanh.pop %v998
    %1001 = vrot.lane.b32.xlu0 %v999, 64
    %v1002 = vpop.permute.xlu0 %1001
    %v1004 = vmul.f32 %v983, %v1002
    %1006 = vrot.lane.b32.xlu0 %v1004, 32
    %v1007 = vpop.permute.xlu0 %1006
    %v1008 = vsel %vm133, %v1007, 0
    %1010 = vmatprep.subr.mxu0 0.0
    %1011 = vmatpush1.msra.mxu0 %v479
    %1012 = vmatprep.subr.mxu0 0.0
    %1013 = vmatpush1.msra.mxu0 %v480
    %1014 = vmatprep.subr.mxu0 0.0
    %1015 = vmatpush1.msra.mxu0 %v481
    %1016 = vmatprep.subr.mxu0 0.0
    %1017 = vmatpush1.msra.mxu0 %v482
    %1018 = vmatprep.subr.mxu0 0.0
    %1019 = vmatpush1.msra.mxu0 0.0
    %1020 = vmatprep.subr.mxu0 0.0
    %1021 = vmatpush1.msra.mxu0 0.0
    %1022 = vmatprep.subr.mxu0 0.0
    %1023 = vmatpush1.msra.mxu0 0.0
    %1024 = vmatprep.subr.mxu0 0.0
    %1025 = vmatpush1.msra.mxu0 0.0
    %1026 = vmatprep.subr.mxu0 0.0
    %1027 = vmatpush1.msra.mxu0 0.0
    %1028 = vmatprep.subr.mxu0 0.0
    %1029 = vmatpush1.msra.mxu0 0.0
    %1030 = vmatprep.subr.mxu0 0.0
    %1031 = vmatpush1.msra.mxu0 0.0
    %1032 = vmatprep.subr.mxu0 0.0
    %1033 = vmatpush1.msra.mxu0 0.0
    %1034 = vmatprep.subr.mxu0 0.0
    %1035 = vmatpush1.msra.mxu0 0.0
    %1036 = vmatprep.subr.mxu0 0.0
    %1037 = vmatpush1.msra.mxu0 0.0
    %1038 = vmatprep.subr.mxu0 0.0
    %1039 = vmatpush1.msra.mxu0 0.0
    %1040 = vmatprep.subr.mxu0 0.0
    %1041 = vmatpush1.msra.mxu0 0.0
    %1042 = vmatprep.subr.mxu0 0.0
    %1043 = vmatpush1.msra.mxu0 0.0
    %1044 = vmatprep.subr.mxu0 0.0
    %1045 = vmatpush1.msra.mxu0 0.0
    %1046 = vmatprep.subr.mxu0 0.0
    %1047 = vmatpush1.msra.mxu0 0.0
    %1048 = vmatprep.subr.mxu0 0.0
    %1049 = vmatpush1.msra.mxu0 0.0
    %1050 = vmatprep.subr.mxu0 0.0
    %1051 = vmatpush1.msra.mxu0 0.0
    %1052 = vmatprep.subr.mxu0 0.0
    %1053 = vmatpush1.msra.mxu0 0.0
    %1054 = vmatprep.subr.mxu0 0.0
    %1055 = vmatpush1.msra.mxu0 0.0
    %1056 = vmatprep.subr.mxu0 0.0
    %1057 = vmatpush1.msra.mxu0 0.0
    %1058 = vmatprep.subr.mxu0 0.0
    %1059 = vmatpush1.msra.mxu0 0.0
    %1060 = vmatprep.subr.mxu0 0.0
    %1061 = vmatpush1.msra.mxu0 0.0
    %1062 = vmatprep.subr.mxu0 0.0
    %1063 = vmatpush1.msra.mxu0 0.0
    %1064 = vmatprep.subr.mxu0 0.0
    %1065 = vmatpush1.msra.mxu0 0.0
    %1066 = vmatprep.subr.mxu0 0.0
    %1067 = vmatpush1.msra.mxu0 0.0
    %1068 = vmatprep.subr.mxu0 0.0
    %1069 = vmatpush1.msra.mxu0 0.0
    %1070 = vmatprep.subr.mxu0 0.0
    %1071 = vmatpush1.msra.mxu0 0.0
    %1072 = vmatprep.subr.mxu0 0.0
    %1073 = vmatpush1.msra.mxu0 0.0
    %1074 = vmatprep.mubr.f32.mxu0 0.0
    %1075 = vmatmul.mubr.f32.gmra.mrb[0].mxu0 %v1008
    %v1076 = vpop.f32.mrb[0].mxu0
    %v1077 = vadd.f32 0.0, %v1076
    %v1078 = vpop.f32.mrb[0].mxu0
    %1079 = vdwg.mxu0
    %v1081 = vrot.slane %v1077, 6
    %v1083 = vadd.f32 %v478, %v1081
    %v1084 = vxor.u32 %v1083, 2147483648
    %v1085 = vmul.f32 %v1084, 1.442695
    %v1086 = vpow.pop %v1085
    %v1087 = vadd.f32 %v1086, 1.0
    %v1088 = vrcp.pop %v1087
    %v1089 = vmul.f32 1.0, %v1088
    %v1090 = vtanh.pop %v1083
    %v1092 = vrot.slane %v998, 6
    %v1094 = vmul.f32 %v1089, %v1092
    %1096 = vrot.lane.b32.xlu0 %v1090, 64
    %v1097 = vpop.permute.xlu0 %1096
    %v1099 = vmul.f32 %v1089, %v1097
    %1101 = vrot.lane.b32.xlu0 %v1099, 32
    %v1102 = vpop.permute.xlu0 %1101
    %v1104 = vadd.f32 %v1094, %v1102
    %v1105 = vtanh.pop %v1104
    %1107 = vrot.lane.b32.xlu0 %v1105, 64
    %v1108 = vpop.permute.xlu0 %1107
    %v1110 = vmul.f32 %v1089, %v1108
    %v1112 = vrot.slane %v1110, 2
    %1113 = vrot.lane.b32.xlu0 %v1112, 32
    %v1114 = vpop.permute.xlu0 %1113
    %v1115 = vsel %vm133, %v1114, 0
    %1117 = vmatprep.subr.mxu0 0.0
    %1118 = vmatpush1.msra.mxu0 %v479
    %1119 = vmatprep.subr.mxu0 0.0
    %1120 = vmatpush1.msra.mxu0 %v480
    %1121 = vmatprep.subr.mxu0 0.0
    %1122 = vmatpush1.msra.mxu0 %v481
    %1123 = vmatprep.subr.mxu0 0.0
    %1124 = vmatpush1.msra.mxu0 %v482
    %1125 = vmatprep.subr.mxu0 0.0
    %1126 = vmatpush1.msra.mxu0 0.0
    %1127 = vmatprep.subr.mxu0 0.0
    %1128 = vmatpush1.msra.mxu0 0.0
    %1129 = vmatprep.subr.mxu0 0.0
    %1130 = vmatpush1.msra.mxu0 0.0
    %1131 = vmatprep.subr.mxu0 0.0
    %1132 = vmatpush1.msra.mxu0 0.0
    %1133 = vmatprep.subr.mxu0 0.0
    %1134 = vmatpush1.msra.mxu0 0.0
    %1135 = vmatprep.subr.mxu0 0.0
    %1136 = vmatpush1.msra.mxu0 0.0
    %1137 = vmatprep.subr.mxu0 0.0
    %1138 = vmatpush1.msra.mxu0 0.0
    %1139 = vmatprep.subr.mxu0 0.0
    %1140 = vmatpush1.msra.mxu0 0.0
    %1141 = vmatprep.subr.mxu0 0.0
    %1142 = vmatpush1.msra.mxu0 0.0
    %1143 = vmatprep.subr.mxu0 0.0
    %1144 = vmatpush1.msra.mxu0 0.0
    %1145 = vmatprep.subr.mxu0 0.0
    %1146 = vmatpush1.msra.mxu0 0.0
    %1147 = vmatprep.subr.mxu0 0.0
    %1148 = vmatpush1.msra.mxu0 0.0
    %1149 = vmatprep.subr.mxu0 0.0
    %1150 = vmatpush1.msra.mxu0 0.0
    %1151 = vmatprep.subr.mxu0 0.0
    %1152 = vmatpush1.msra.mxu0 0.0
    %1153 = vmatprep.subr.mxu0 0.0
    %1154 = vmatpush1.msra.mxu0 0.0
    %1155 = vmatprep.subr.mxu0 0.0
    %1156 = vmatpush1.msra.mxu0 0.0
    %1157 = vmatprep.subr.mxu0 0.0
    %1158 = vmatpush1.msra.mxu0 0.0
    %1159 = vmatprep.subr.mxu0 0.0
    %1160 = vmatpush1.msra.mxu0 0.0
    %1161 = vmatprep.subr.mxu0 0.0
    %1162 = vmatpush1.msra.mxu0 0.0
    %1163 = vmatprep.subr.mxu0 0.0
    %1164 = vmatpush1.msra.mxu0 0.0
    %1165 = vmatprep.subr.mxu0 0.0
    %1166 = vmatpush1.msra.mxu0 0.0
    %1167 = vmatprep.subr.mxu0 0.0
    %1168 = vmatpush1.msra.mxu0 0.0
    %1169 = vmatprep.subr.mxu0 0.0
    %1170 = vmatpush1.msra.mxu0 0.0
    %1171 = vmatprep.subr.mxu0 0.0
    %1172 = vmatpush1.msra.mxu0 0.0
    %1173 = vmatprep.subr.mxu0 0.0
    %1174 = vmatpush1.msra.mxu0 0.0
    %1175 = vmatprep.subr.mxu0 0.0
    %1176 = vmatpush1.msra.mxu0 0.0
    %1177 = vmatprep.subr.mxu0 0.0
    %1178 = vmatpush1.msra.mxu0 0.0
    %1179 = vmatprep.subr.mxu0 0.0
    %1180 = vmatpush1.msra.mxu0 0.0
    %1181 = vmatprep.mubr.f32.mxu0 0.0
    %1182 = vmatmul.mubr.f32.gmra.mrb[0].mxu0 %v1115
    %v1183 = vpop.f32.mrb[0].mxu0
    %v1184 = vadd.f32 0.0, %v1183
    %v1185 = vpop.f32.mrb[0].mxu0
    %1186 = vdwg.mxu0
    %v1188 = vrot.slane %v1184, 4
    %v1190 = vadd.f32 %v478, %v1188
    %v1191 = vxor.u32 %v1190, 2147483648
    %v1192 = vmul.f32 %v1191, 1.442695
    %v1193 = vpow.pop %v1192
    %v1194 = vadd.f32 %v1193, 1.0
    %v1195 = vrcp.pop %v1194
    %v1196 = vmul.f32 1.0, %v1195
    %v1197 = vtanh.pop %v1190
    %v1199 = vrot.slane %v1104, 6
    %v1201 = vmul.f32 %v1196, %v1199
    %1203 = vrot.lane.b32.xlu0 %v1197, 64
    %v1204 = vpop.permute.xlu0 %1203
    %v1206 = vmul.f32 %v1196, %v1204
    %1208 = vrot.lane.b32.xlu0 %v1206, 32
    %v1209 = vpop.permute.xlu0 %1208
    %v1211 = vadd.f32 %v1201, %v1209
    %v1212 = vtanh.pop %v1211
    %1214 = vrot.lane.b32.xlu0 %v1212, 64
    %v1215 = vpop.permute.xlu0 %1214
    %v1217 = vmul.f32 %v1196, %v1215
    %v1219 = vrot.slane %v1217, 4
    %1220 = vrot.lane.b32.xlu0 %v1219, 32
    %v1221 = vpop.permute.xlu0 %1220
    %v1222 = vsel %vm133, %v1221, 0
    %1224 = vmatprep.subr.mxu0 0.0
    %1225 = vmatpush1.msra.mxu0 %v479
    %1226 = vmatprep.subr.mxu0 0.0
    %1227 = vmatpush1.msra.mxu0 %v480
    %1228 = vmatprep.subr.mxu0 0.0
    %1229 = vmatpush1.msra.mxu0 %v481
    %1230 = vmatprep.subr.mxu0 0.0
    %1231 = vmatpush1.msra.mxu0 %v482
    %1232 = vmatprep.subr.mxu0 0.0
    %1233 = vmatpush1.msra.mxu0 0.0
    %1234 = vmatprep.subr.mxu0 0.0
    %1235 = vmatpush1.msra.mxu0 0.0
    %1236 = vmatprep.subr.mxu0 0.0
    %1237 = vmatpush1.msra.mxu0 0.0
    %1238 = vmatprep.subr.mxu0 0.0
    %1239 = vmatpush1.msra.mxu0 0.0
    %1240 = vmatprep.subr.mxu0 0.0
    %1241 = vmatpush1.msra.mxu0 0.0
    %1242 = vmatprep.subr.mxu0 0.0
    %1243 = vmatpush1.msra.mxu0 0.0
    %1244 = vmatprep.subr.mxu0 0.0
    %1245 = vmatpush1.msra.mxu0 0.0
    %1246 = vmatprep.subr.mxu0 0.0
    %1247 = vmatpush1.msra.mxu0 0.0
    %1248 = vmatprep.subr.mxu0 0.0
    %1249 = vmatpush1.msra.mxu0 0.0
    %1250 = vmatprep.subr.mxu0 0.0
    %1251 = vmatpush1.msra.mxu0 0.0
    %1252 = vmatprep.subr.mxu0 0.0
    %1253 = vmatpush1.msra.mxu0 0.0
    %1254 = vmatprep.subr.mxu0 0.0
    %1255 = vmatpush1.msra.mxu0 0.0
    %1256 = vmatprep.subr.mxu0 0.0
    %1257 = vmatpush1.msra.mxu0 0.0
    %1258 = vmatprep.subr.mxu0 0.0
    %1259 = vmatpush1.msra.mxu0 0.0
    %1260 = vmatprep.subr.mxu0 0.0
    %1261 = vmatpush1.msra.mxu0 0.0
    %1262 = vmatprep.subr.mxu0 0.0
    %1263 = vmatpush1.msra.mxu0 0.0
    %1264 = vmatprep.subr.mxu0 0.0
    %1265 = vmatpush1.msra.mxu0 0.0
    %1266 = vmatprep.subr.mxu0 0.0
    %1267 = vmatpush1.msra.mxu0 0.0
    %1268 = vmatprep.subr.mxu0 0.0
    %1269 = vmatpush1.msra.mxu0 0.0
    %1270 = vmatprep.subr.mxu0 0.0
    %1271 = vmatpush1.msra.mxu0 0.0
    %1272 = vmatprep.subr.mxu0 0.0
    %1273 = vmatpush1.msra.mxu0 0.0
    %1274 = vmatprep.subr.mxu0 0.0
    %1275 = vmatpush1.msra.mxu0 0.0
    %1276 = vmatprep.subr.mxu0 0.0
    %1277 = vmatpush1.msra.mxu0 0.0
    %1278 = vmatprep.subr.mxu0 0.0
    %1279 = vmatpush1.msra.mxu0 0.0
    %1280 = vmatprep.subr.mxu0 0.0
    %1281 = vmatpush1.msra.mxu0 0.0
    %1282 = vmatprep.subr.mxu0 0.0
    %1283 = vmatpush1.msra.mxu0 0.0
    %1284 = vmatprep.subr.mxu0 0.0
    %1285 = vmatpush1.msra.mxu0 0.0
    %1286 = vmatprep.subr.mxu0 0.0
    %1287 = vmatpush1.msra.mxu0 0.0
    %1288 = vmatprep.mubr.f32.mxu0 0.0
    %1289 = vmatmul.mubr.f32.gmra.mrb[0].mxu0 %v1222
    %v1290 = vpop.f32.mrb[0].mxu0
    %v1291 = vadd.f32 0.0, %v1290
    %v1292 = vpop.f32.mrb[0].mxu0
    %1293 = vdwg.mxu0
    %v1295 = vrot.slane %v1291, 2
    %v1297 = vadd.f32 %v478, %v1295
    %v1298 = vxor.u32 %v1297, 2147483648
    %v1299 = vmul.f32 %v1298, 1.442695
    %v1300 = vpow.pop %v1299
    %v1301 = vadd.f32 %v1300, 1.0
    %v1302 = vrcp.pop %v1301
    %v1303 = vmul.f32 1.0, %v1302
    %v1304 = vtanh.pop %v1297
    %v1306 = vrot.slane %v1211, 6
    %v1308 = vmul.f32 %v1303, %v1306
    %1310 = vrot.lane.b32.xlu0 %v1304, 64
    %v1311 = vpop.permute.xlu0 %1310
    %v1313 = vmul.f32 %v1303, %v1311
    %1315 = vrot.lane.b32.xlu0 %v1313, 32
    %v1316 = vpop.permute.xlu0 %1315
    %v1318 = vadd.f32 %v1308, %v1316
    %v1319 = vtanh.pop %v1318
    %1321 = vrot.lane.b32.xlu0 %v1319, 64
    %v1322 = vpop.permute.xlu0 %1321
    %v1324 = vmul.f32 %v1303, %v1322
    %vm1325 = vcmask 1041408
    %v1326 = vsel %vm1325, %v580, %v686
    %vm1327 = vcmask 1043456
    %v1328 = vsel %vm1327, %v1326, %v793
    %vm1329 = vcmask 1045504
    %v1330 = vsel %vm1329, %v1328, %v900
    %v1331 = vsel %vm1325, %v1004, %v1110
    %v1332 = vsel %vm1327, %v1331, %v1217
    %v1333 = vsel %vm1329, %v1332, %v1324
    %v1334 = vmax.f32 %v1330, 0.0
    %v1335 = vmax.f32 %v1333, 0.0
    %v1336 = vld [vmem:[#allocation2 + $0x80] sm:$0xff]
    %v1337 = vld [vmem:[#allocation2 + $0x88] sm:$0xff]
    %v1338 = vld [vmem:[#allocation2 + $0x90] sm:$0xff]
    %v1339 = vld [vmem:[#allocation2 + $0x98] sm:$0xff]
    %v1340 = vlaneseq
    %v1341 = vshrl.u32 %v1340, 7
    %v1342 = vsub.s32 4, %v1341
    %v1343 = vrot.slane %v32, %v1342
    %1346 = vrot.lane.b32.xlu0 %v1334, 32
    %v1347 = vpop.permute.xlu0 %1346
    %1348 = vrot.lane.b32.xlu0 %v1335, 32
    %v1349 = vpop.permute.xlu0 %1348
    %v1350 = vsel %vm133, %v1347, 0
    %v1352 = vsel %vm133, %v1349, 0
    %1354 = vmatprep.subr.mxu0 0.0
    %1355 = vmatpush1.msra.mxu0 %v1336
    %1356 = vmatprep.subr.mxu0 0.0
    %1357 = vmatpush1.msra.mxu0 %v1337
    %1358 = vmatprep.subr.mxu0 0.0
    %1359 = vmatpush1.msra.mxu0 %v1338
    %1360 = vmatprep.subr.mxu0 0.0
    %1361 = vmatpush1.msra.mxu0 %v1339
    %1362 = vmatprep.subr.mxu0 0.0
    %1363 = vmatpush1.msra.mxu0 0.0
    %1364 = vmatprep.subr.mxu0 0.0
    %1365 = vmatpush1.msra.mxu0 0.0
    %1366 = vmatprep.subr.mxu0 0.0
    %1367 = vmatpush1.msra.mxu0 0.0
    %1368 = vmatprep.subr.mxu0 0.0
    %1369 = vmatpush1.msra.mxu0 0.0
    %1370 = vmatprep.subr.mxu0 0.0
    %1371 = vmatpush1.msra.mxu0 0.0
    %1372 = vmatprep.subr.mxu0 0.0
    %1373 = vmatpush1.msra.mxu0 0.0
    %1374 = vmatprep.subr.mxu0 0.0
    %1375 = vmatpush1.msra.mxu0 0.0
    %1376 = vmatprep.subr.mxu0 0.0
    %1377 = vmatpush1.msra.mxu0 0.0
    %1378 = vmatprep.subr.mxu0 0.0
    %1379 = vmatpush1.msra.mxu0 0.0
    %1380 = vmatprep.subr.mxu0 0.0
    %1381 = vmatpush1.msra.mxu0 0.0
    %1382 = vmatprep.subr.mxu0 0.0
    %1383 = vmatpush1.msra.mxu0 0.0
    %1384 = vmatprep.subr.mxu0 0.0
    %1385 = vmatpush1.msra.mxu0 0.0
    %1386 = vmatprep.subr.mxu0 0.0
    %1387 = vmatpush1.msra.mxu0 0.0
    %1388 = vmatprep.subr.mxu0 0.0
    %1389 = vmatpush1.msra.mxu0 0.0
    %1390 = vmatprep.subr.mxu0 0.0
    %1391 = vmatpush1.msra.mxu0 0.0
    %1392 = vmatprep.subr.mxu0 0.0
    %1393 = vmatpush1.msra.mxu0 0.0
    %1394 = vmatprep.subr.mxu0 0.0
    %1395 = vmatpush1.msra.mxu0 0.0
    %1396 = vmatprep.subr.mxu0 0.0
    %1397 = vmatpush1.msra.mxu0 0.0
    %1398 = vmatprep.subr.mxu0 0.0
    %1399 = vmatpush1.msra.mxu0 0.0
    %1400 = vmatprep.subr.mxu0 0.0
    %1401 = vmatpush1.msra.mxu0 0.0
    %1402 = vmatprep.subr.mxu0 0.0
    %1403 = vmatpush1.msra.mxu0 0.0
    %1404 = vmatprep.subr.mxu0 0.0
    %1405 = vmatpush1.msra.mxu0 0.0
    %1406 = vmatprep.subr.mxu0 0.0
    %1407 = vmatpush1.msra.mxu0 0.0
    %1408 = vmatprep.subr.mxu0 0.0
    %1409 = vmatpush1.msra.mxu0 0.0
    %1410 = vmatprep.subr.mxu0 0.0
    %1411 = vmatpush1.msra.mxu0 0.0
    %1412 = vmatprep.subr.mxu0 0.0
    %1413 = vmatpush1.msra.mxu0 0.0
    %1414 = vmatprep.subr.mxu0 0.0
    %1415 = vmatpush1.msra.mxu0 0.0
    %1416 = vmatprep.subr.mxu0 0.0
    %1417 = vmatpush1.msra.mxu0 0.0
    %1418 = vmatprep.mubr.f32.mxu0 0.0
    %1419 = vmatmul.mubr.f32.gmra.mrb[0].mxu0 %v1350
    %v1420 = vpop.f32.mrb[0].mxu0
    %v1421 = vadd.f32 %v1343, %v1420
    %v1422 = vpop.f32.mrb[0].mxu0
    %1423 = vmatprep.mubr.f32.mxu0 0.0
    %1424 = vmatmul.mubr.f32.gmra.mrb[0].mxu0 %v1352
    %v1425 = vpop.f32.mrb[0].mxu0
    %v1426 = vadd.f32 %v1343, %v1425
    %v1427 = vpop.f32.mrb[0].mxu0
    %1428 = vdwg.mxu0
    %v1429 = vmax.f32 %v1421, 0.0
    %v1430 = vmax.f32 %v1426, 0.0
    %v1431 = vld [vmem:[#allocation2 + $0xa0] sm:$0xff]
    %v1432 = vld [vmem:[#allocation2 + $0xa8] sm:$0xff]
    %v1433 = vld [vmem:[#allocation2 + $0xb0] sm:$0xff]
    %v1434 = vld [vmem:[#allocation2 + $0xb8] sm:$0xff]
    %v1435 = vlaneseq
    %v1436 = vshrl.u32 %v1435, 7
    %v1437 = vsub.s32 5, %v1436
    %v1438 = vrot.slane %v32, %v1437
    %v1440 = vsel %vm133, %v1429, 0
    %v1443 = vsel %vm133, %v1430, 0
    %1445 = vmatprep.subr.mxu0 0.0
    %1446 = vmatpush1.msra.mxu0 %v1431
    %1447 = vmatprep.subr.mxu0 0.0
    %1448 = vmatpush1.msra.mxu0 %v1432
    %1449 = vmatprep.subr.mxu0 0.0
    %1450 = vmatpush1.msra.mxu0 %v1433
    %1451 = vmatprep.subr.mxu0 0.0
    %1452 = vmatpush1.msra.mxu0 %v1434
    %1453 = vmatprep.subr.mxu0 0.0
    %1454 = vmatpush1.msra.mxu0 0.0
    %1455 = vmatprep.subr.mxu0 0.0
    %1456 = vmatpush1.msra.mxu0 0.0
    %1457 = vmatprep.subr.mxu0 0.0
    %1458 = vmatpush1.msra.mxu0 0.0
    %1459 = vmatprep.subr.mxu0 0.0
    %1460 = vmatpush1.msra.mxu0 0.0
    %1461 = vmatprep.subr.mxu0 0.0
    %1462 = vmatpush1.msra.mxu0 0.0
    %1463 = vmatprep.subr.mxu0 0.0
    %1464 = vmatpush1.msra.mxu0 0.0
    %1465 = vmatprep.subr.mxu0 0.0
    %1466 = vmatpush1.msra.mxu0 0.0
    %1467 = vmatprep.subr.mxu0 0.0
    %1468 = vmatpush1.msra.mxu0 0.0
    %1469 = vmatprep.subr.mxu0 0.0
    %1470 = vmatpush1.msra.mxu0 0.0
    %1471 = vmatprep.subr.mxu0 0.0
    %1472 = vmatpush1.msra.mxu0 0.0
    %1473 = vmatprep.subr.mxu0 0.0
    %1474 = vmatpush1.msra.mxu0 0.0
    %1475 = vmatprep.subr.mxu0 0.0
    %1476 = vmatpush1.msra.mxu0 0.0
    %1477 = vmatprep.subr.mxu0 0.0
    %1478 = vmatpush1.msra.mxu0 0.0
    %1479 = vmatprep.subr.mxu0 0.0
    %1480 = vmatpush1.msra.mxu0 0.0
    %1481 = vmatprep.subr.mxu0 0.0
    %1482 = vmatpush1.msra.mxu0 0.0
    %1483 = vmatprep.subr.mxu0 0.0
    %1484 = vmatpush1.msra.mxu0 0.0
    %1485 = vmatprep.subr.mxu0 0.0
    %1486 = vmatpush1.msra.mxu0 0.0
    %1487 = vmatprep.subr.mxu0 0.0
    %1488 = vmatpush1.msra.mxu0 0.0
    %1489 = vmatprep.subr.mxu0 0.0
    %1490 = vmatpush1.msra.mxu0 0.0
    %1491 = vmatprep.subr.mxu0 0.0
    %1492 = vmatpush1.msra.mxu0 0.0
    %1493 = vmatprep.subr.mxu0 0.0
    %1494 = vmatpush1.msra.mxu0 0.0
    %1495 = vmatprep.subr.mxu0 0.0
    %1496 = vmatpush1.msra.mxu0 0.0
    %1497 = vmatprep.subr.mxu0 0.0
    %1498 = vmatpush1.msra.mxu0 0.0
    %1499 = vmatprep.subr.mxu0 0.0
    %1500 = vmatpush1.msra.mxu0 0.0
    %1501 = vmatprep.subr.mxu0 0.0
    %1502 = vmatpush1.msra.mxu0 0.0
    %1503 = vmatprep.subr.mxu0 0.0
    %1504 = vmatpush1.msra.mxu0 0.0
    %1505 = vmatprep.subr.mxu0 0.0
    %1506 = vmatpush1.msra.mxu0 0.0
    %1507 = vmatprep.subr.mxu0 0.0
    %1508 = vmatpush1.msra.mxu0 0.0
    %1509 = vmatprep.mubr.f32.mxu0 0.0
    %1510 = vmatmul.mubr.f32.gmra.mrb[0].mxu0 %v1440
    %v1511 = vpop.f32.mrb[0].mxu0
    %v1512 = vadd.f32 %v1438, %v1511
    %v1513 = vpop.f32.mrb[0].mxu0
    %1514 = vmatprep.mubr.f32.mxu0 0.0
    %1515 = vmatmul.mubr.f32.gmra.mrb[0].mxu0 %v1443
    %v1516 = vpop.f32.mrb[0].mxu0
    %v1517 = vadd.f32 %v1438, %v1516
    %v1518 = vpop.f32.mrb[0].mxu0
    %1519 = vdwg.mxu0
    %1520 = vst [vmem:[#allocation5] sm:$0xff] %v1512
    %1521 = vst [vmem:[#allocation5 + $0x8] sm:$0xff] %v1517
    // Predicated region
    $region22: #{tpu_custom_call.1} parent=1 // pred_check
      _
    $region23: #{tpu_custom_call.1} parent=1 // pred_check_branch
      %1523 = sbr.rel (0) target = $region25
    $region24: #{tpu_custom_call.1} parent=1 // pred_region
      %s1525 = ssub.s32 256, 256
      %1526 = vsyncadd [#allocation4], %s1525
      %s1527 = sshll.u32 [#allocation5], 4
      %s1528 = int_to_ptr.vmem [resolvable:$true] %s1527
      %1533 = dma.vmem_to_hbm [thread:$0]  %s1528, 256, %s4, [#allocation4], 128, 128, 8
    $region25: #{tpu_custom_call.1} parent=1 // pred_fallthru
      _
    // Predicated region
    $region26: #{tpu_custom_call.1} parent=1 // pred_check
      _
    $region27: #{tpu_custom_call.1} parent=1 // pred_check_branch
      %1535 = sbr.rel (0) target = $region29
    $region28: #{tpu_custom_call.1} parent=1 // pred_region
      %1536 = dma.done [#allocation4], 256
    $region29: #{tpu_custom_call.1} parent=1 // pred_fallthru
      _
    %1537 = vsyncpa [#allocation3], 1
    %1538 = vsyncpa [#allocation4], 1

</llo_original>
